<compile_context>
chip_gen: v7x
topology: tpu7x:2x2x1
jax: 0.10.0
libtpu: 0.0.40
codegen_flags: <defaults>
</compile_context>

<pallas_src>
import jax
import jax.numpy as jnp
import numpy as np
from jax import lax
from jax.experimental import pallas as pl
from jax.experimental.pallas import tpu as pltpu


# ---------------------------------------------------------------------------
# Kernel
# ---------------------------------------------------------------------------
def _make_kernel(H, n_mlp_layers, chunk_t, Bp, compute_dtype):
    """Fused (input-projection -> LSTM recurrence -> MLP head) chunk kernel.

    Ref order: x_chunk, w_ih, w_hh, bias, [w, b]*n_mlp, out, h_scr, c_scr,
               gx_scr, hid_scr.
    """

    def kernel(*refs):
        x_ref, wih_ref, whh_ref, bias_ref = refs[:4]
        mlp_refs = refs[4:4 + 2 * n_mlp_layers]
        out_ref = refs[4 + 2 * n_mlp_layers]
        h_scr, c_scr, gx_scr, hid_scr = refs[4 + 2 * n_mlp_layers + 1:]

        chunk = pl.program_id(0)

        @pl.when(chunk == 0)
        def _():
            h_scr[...] = jnp.zeros_like(h_scr)
            c_scr[...] = jnp.zeros_like(c_scr)

        # ---- Phase A: batched input projection for the whole chunk (MXU-filling).
        # x_ref: (chunk_t*Bp, D_in) in compute dtype; bias = b_ih + b_hh (f32).
        gx = jnp.dot(x_ref[...], wih_ref[...],
                     preferred_element_type=jnp.float32) + bias_ref[...]
        gx_scr[...] = gx.astype(gx_scr.dtype)

        w_hh = whh_ref[...]  # (H, 4H), compute dtype, VMEM-resident for the chunk

        # ---- Phase B: serial recurrence; all accesses are full-sublane (Bp % 8 == 0).
        def step(t, carry):
            h, c = carry                                   # f32 (Bp, H)
            row = pl.multiple_of(t * Bp, Bp)               # Bp is a multiple of 8
            gx_t = gx_scr[pl.ds(row, Bp), :]               # (Bp, 4H)
            gates = gx_t.astype(jnp.float32) + jnp.dot(
                h.astype(compute_dtype), w_hh, preferred_element_type=jnp.float32)
            # PyTorch gate order: i, f, g, o.  Gate math and c/h state stay f32.
            i_g = jax.nn.sigmoid(gates[:, 0 * H:1 * H])
            f_g = jax.nn.sigmoid(gates[:, 1 * H:2 * H])
            g_g = jnp.tanh(gates[:, 2 * H:3 * H])
            o_g = jax.nn.sigmoid(gates[:, 3 * H:4 * H])
            c_new = f_g * c + i_g * g_g
            h_new = o_g * jnp.tanh(c_new)
            hid_scr[pl.ds(row, Bp), :] = h_new.astype(hid_scr.dtype)
            return (h_new, c_new)

        # Unroll heuristic (sweep 4/8/16/full per shape; full only for small chunks
        # to avoid vreg spill putting vld/vst on the serial critical path).
        unroll = chunk_t if chunk_t <= 16 else 8
        h_fin, c_fin = lax.fori_loop(0, chunk_t, step,
                                     (h_scr[...], c_scr[...]), unroll=unroll)
        h_scr[...] = h_fin
        c_scr[...] = c_fin

        # ---- Phase C: MLP head on the whole chunk's hiddens (tall matmuls).
        v = hid_scr[...]                                   # (chunk_t*Bp, H)
        for li in range(n_mlp_layers):
            w = mlp_refs[2 * li][...]                      # compute dtype
            b = mlp_refs[2 * li + 1][...]                  # f32
            v = jnp.dot(v.astype(compute_dtype), w,
                        preferred_element_type=jnp.float32) + b
            if li < n_mlp_layers - 1:
                v = jnp.maximum(v, 0.0)

        # Lane-dense output store: last layer was padded to a 128-multiple width.
        out_ref[...] = v.astype(out_ref.dtype)

    return kernel


# ---------------------------------------------------------------------------
# Wrapper
# ---------------------------------------------------------------------------
_CHUNK_VMEM_BUDGET = 24 << 20   # per-chunk working-set target (safe on v7x 64 MiB)


def forward_agg_rnn_model(x, params, *, use_bf16=True):
    """x: (T, B, D_in) float32. Returns context: (T, B, latent) float32."""
    T, B, D_in = x.shape
    w_ih, w_hh, b_ih, b_hh = params["lstm"]      # (D_in,4H), (H,4H), (1,4H), (1,4H)
    mlp = params["mlp"]                          # list of (w: (fin,fout), b: (1,fout))
    H = w_hh.shape[0]
    n_mlp = len(mlp)
    latent = mlp[-1][0].shape[1]

    compute_dtype = jnp.bfloat16 if use_bf16 else jnp.float32
    slab_dtype = compute_dtype                   # gx / hiddens chunk slabs
    cd_bytes = jnp.dtype(compute_dtype).itemsize
    sd_bytes = jnp.dtype(slab_dtype).itemsize

    # --- Sublane padding: pad batch to a multiple of 8 (f32 sublane count).
    Bp = ((B + 7) // 8) * 8
    if Bp != B:
        x = jnp.pad(x, ((0, 0), (0, Bp - B), (0, 0)))

    # --- Lane-dense output: pad the last MLP layer to a 128-lane multiple.
    out_lanes = max(128, ((latent + 127) // 128) * 128)
    w_last, b_last = mlp[-1]
    if out_lanes != latent:
        w_last = jnp.pad(w_last, ((0, 0), (0, out_lanes - latent)))
        b_last = jnp.pad(b_last, ((0, 0), (0, out_lanes - latent)))
    mlp_p = list(mlp[:-1]) + [(w_last, b_last)]

    # Fold the two LSTM biases into one (removes a per-step add + broadcast).
    bias = (b_ih + b_hh).astype(jnp.float32)     # (1, 4H)

    # --- VMEM-budget-aware chunk sizing (instead of a fixed max chunk).
    def chunk_bytes(ct):
        rows = ct * Bp
        return (2 * rows * D_in * cd_bytes        # x chunk, double-buffered
                + 2 * rows * out_lanes * 4        # output chunk, double-buffered
                + rows * 4 * H * sd_bytes         # gx slab
                + rows * H * sd_bytes)            # hiddens slab

    chunk_t = 1
    for c in range(1, T + 1):
        if T % c == 0 and chunk_bytes(c) <= _CHUNK_VMEM_BUDGET:
            chunk_t = c
    n_chunks = T // chunk_t
    rows = chunk_t * Bp

    # --- Parameters (constant-index full-array blocks, VMEM-resident).
    flat_params = [w_ih.astype(compute_dtype), w_hh.astype(compute_dtype), bias]
    for w, b in mlp_p:
        flat_params += [w.astype(compute_dtype), b.astype(jnp.float32)]
    params_bytes = sum(int(np.prod(a.shape)) * jnp.dtype(a.dtype).itemsize
                       for a in flat_params)

    # Explicit scoped-VMEM limit with headroom (>= default, < v7x's 64 MiB).
    used = chunk_bytes(chunk_t) + params_bytes + 2 * Bp * H * 4
    vmem_limit = int(min(max(int(used * 1.5), 32 << 20), 48 << 20))

    # Flat, time-major view of x: rows = T*Bp, contiguous, free reshape.
    x2d = x.reshape(T * Bp, D_in).astype(compute_dtype)

    kernel = _make_kernel(H, n_mlp, chunk_t, Bp, compute_dtype)

    const_spec = lambda a: pl.BlockSpec(a.shape, lambda i: (0,) * a.ndim)
    in_specs = [pl.BlockSpec((rows, D_in), lambda i: (i, 0))]
    in_specs += [const_spec(a) for a in flat_params]
    out_spec = pl.BlockSpec((rows, out_lanes), lambda i: (i, 0))

    fn = pl.pallas_call(
        kernel,
        out_shape=jax.ShapeDtypeStruct((T * Bp, out_lanes), jnp.float32),
        grid_spec=pltpu.PrefetchScalarGridSpec(
            num_scalar_prefetch=0,
            grid=(n_chunks,),
            in_specs=in_specs,
            out_specs=out_spec,
            scratch_shapes=[
                pltpu.VMEM((Bp, H), jnp.float32),          # h carry (across chunks)
                pltpu.VMEM((Bp, H), jnp.float32),          # c carry (across chunks)
                pltpu.VMEM((rows, 4 * H), slab_dtype),     # gates_x slab for the chunk
                pltpu.VMEM((rows, H), slab_dtype),         # hiddens slab for the chunk
            ],
        ),
        compiler_params=pltpu.CompilerParams(
            # The h/c carry requires strictly in-order chunk execution.
            dimension_semantics=("arbitrary",),
            vmem_limit_bytes=vmem_limit,
        ),
    )
    out2d = fn(x2d, *flat_params)
    return out2d.reshape(T, Bp, out_lanes)[:, :B, :latent]


# ---------------------------------------------------------------------------
# Pure-JAX reference (numerical check against the Pallas kernel).
# ---------------------------------------------------------------------------
def reference_forward(x, params):
    w_ih, w_hh, b_ih, b_hh = params["lstm"]
    H = w_hh.shape[0]
    T, B, _ = x.shape

    def step(carry, x_t):
        h, c = carry
        gates = x_t @ w_ih + b_ih + h @ w_hh + b_hh
        i = jax.nn.sigmoid(gates[:, 0 * H:1 * H])
        f = jax.nn.sigmoid(gates[:, 1 * H:2 * H])
        g = jnp.tanh(gates[:, 2 * H:3 * H])
        o = jax.nn.sigmoid(gates[:, 3 * H:4 * H])
        c_new = f * c + i * g
        h_new = o * jnp.tanh(c_new)
        return (h_new, c_new), h_new

    init = (jnp.zeros((B, H), jnp.float32), jnp.zeros((B, H), jnp.float32))
    _, hiddens = lax.scan(step, init, x)          # (T, B, H)

    v = hiddens.reshape(T * B, H)
    mlp = params["mlp"]
    for li, (w, b) in enumerate(mlp):
        v = v @ w + b
        if li < len(mlp) - 1:
            v = jnp.maximum(v, 0.0)
    return v.reshape(T, B, -1)


def init_params(key, input_size, hidden_sizes, latent_size):
    H = latent_size
    ks = jax.random.split(key, 8 + 2 * len(hidden_sizes))
    s = 1.0 / np.sqrt(H)
    uni = lambda k, shape, scale: jax.random.uniform(
        k, shape, jnp.float32, minval=-scale, maxval=scale)

    # LSTM params, stored pre-transposed: (in_features, 4H); gate order i, f, g, o.
    w_ih = uni(ks[0], (input_size, 4 * H), s)
    w_hh = uni(ks[1], (H, 4 * H), s)
    b_ih = uni(ks[2], (1, 4 * H), s)
    b_hh = uni(ks[3], (1, 4 * H), s)

    # MLP head: latent -> hidden_sizes... -> latent (ReLU between, linear output).
    mlp = []
    sizes = [latent_size] + list(hidden_sizes) + [latent_size]
    ki = 4
    for fin, fout in zip(sizes[:-1], sizes[1:]):
        scale = 1.0 / np.sqrt(fin)
        w = uni(ks[ki], (fin, fout), scale)
        b = uni(ks[ki + 1], (1, fout), scale)
        mlp.append((w, b))
        ki += 2

    return {"lstm": (w_ih, w_hh, b_ih, b_hh), "mlp": mlp}


if __name__ == "__main__":
    # Small shapes consistent with the module's forward: x is (T, B, input_size).
    T, B = 8, 2
    input_size = 16
    hidden_sizes = [64]
    latent_size = 32

    key = jax.random.PRNGKey(0)
    k_x, k_p = jax.random.split(key)
    x = jax.random.normal(k_x, (T, B, input_size), dtype=jnp.float32)
    params = init_params(k_p, input_size, hidden_sizes, latent_size)

    ref = jax.block_until_ready(reference_forward(x, params))

    # f32 MXU path: tight parity with the reference.
    out_f32 = jax.block_until_ready(forward_agg_rnn_model(x, params, use_bf16=False))
    assert out_f32.shape == (T, B, latent_size)
    np.testing.assert_allclose(np.asarray(out_f32), np.asarray(ref),
                               rtol=1e-5, atol=1e-5)

    # bf16 MXU path (performance default): bf16-level parity.
    out_bf16 = jax.block_until_ready(forward_agg_rnn_model(x, params, use_bf16=True))
    assert out_bf16.shape == (T, B, latent_size)
    np.testing.assert_allclose(np.asarray(out_bf16), np.asarray(ref),
                               rtol=5e-2, atol=5e-2)

    print("KERNEL_OK")
</pallas_src>

<mosaic_0001>
module attributes {stable_mosaic.version = 11 : i64} {
  func.func @kernel(%arg0: i32, %arg1: memref<64x16xf32, #tpu.memory_space<vmem>>, %arg2: memref<16x128xf32, #tpu.memory_space<vmem>>, %arg3: memref<32x128xf32, #tpu.memory_space<vmem>>, %arg4: memref<1x128xf32, #tpu.memory_space<vmem>>, %arg5: memref<32x64xf32, #tpu.memory_space<vmem>>, %arg6: memref<1x64xf32, #tpu.memory_space<vmem>>, %arg7: memref<64x128xf32, #tpu.memory_space<vmem>>, %arg8: memref<1x128xf32, #tpu.memory_space<vmem>>, %arg9: memref<64x128xf32, #tpu.memory_space<vmem>>, %arg10: memref<8x32xf32, #tpu.memory_space<vmem>>, %arg11: memref<8x32xf32, #tpu.memory_space<vmem>>, %arg12: memref<64x128xf32, #tpu.memory_space<vmem>>, %arg13: memref<64x32xf32, #tpu.memory_space<vmem>>) attributes {dimension_semantics = [#tpu.dimension_semantics<arbitrary>], iteration_bounds = array<i64: 1>, scalar_prefetch = 0 : i64, scratch_operands = 4 : i64, tpu.core_type = #tpu.core_type<tc>, window_params = [{transform_indices = @transform_0, window_bounds = array<i64: 64, 16>}, {pipeline_mode = #tpu.pipeline_mode<synchronous>, transform_indices = @transform_1, window_bounds = array<i64: 16, 128>}, {pipeline_mode = #tpu.pipeline_mode<synchronous>, transform_indices = @transform_2, window_bounds = array<i64: 32, 128>}, {pipeline_mode = #tpu.pipeline_mode<synchronous>, transform_indices = @transform_3, window_bounds = array<i64: 1, 128>}, {pipeline_mode = #tpu.pipeline_mode<synchronous>, transform_indices = @transform_4, window_bounds = array<i64: 32, 64>}, {pipeline_mode = #tpu.pipeline_mode<synchronous>, transform_indices = @transform_5, window_bounds = array<i64: 1, 64>}, {pipeline_mode = #tpu.pipeline_mode<synchronous>, transform_indices = @transform_6, window_bounds = array<i64: 64, 128>}, {pipeline_mode = #tpu.pipeline_mode<synchronous>, transform_indices = @transform_7, window_bounds = array<i64: 1, 128>}, {transform_indices = @transform_8, window_bounds = array<i64: 64, 128>}]} {
    %c0_i32 = arith.constant 0 : i32
    %0 = arith.cmpi eq, %arg0, %c0_i32 : i32
    %1 = arith.extui %0 : i1 to i32
    %c0_i32_0 = arith.constant 0 : i32
    %2 = arith.cmpi ne, %1, %c0_i32_0 : i32
    scf.if %2 {
      %cst_90 = arith.constant 0.000000e+00 : f32
      %293 = vector.broadcast %cst_90 : f32 to vector<8x32xf32>
      %c0_91 = arith.constant 0 : index
      %c0_92 = arith.constant 0 : index
      %294 = vector.load %arg10[%c0_91, %c0_92] : memref<8x32xf32, #tpu.memory_space<vmem>>, vector<8x32xf32>
      tpu.vector_store %arg10[%c0_91, %c0_92], %293 {strides = array<i32>} : memref<8x32xf32, #tpu.memory_space<vmem>>, vector<8x32xf32>,
      %cst_93 = arith.constant 0.000000e+00 : f32
      %295 = vector.broadcast %cst_93 : f32 to vector<8x32xf32>
      %c0_94 = arith.constant 0 : index
      %c0_95 = arith.constant 0 : index
      %296 = vector.load %arg11[%c0_94, %c0_95] : memref<8x32xf32, #tpu.memory_space<vmem>>, vector<8x32xf32>
      tpu.vector_store %arg11[%c0_94, %c0_95], %295 {strides = array<i32>} : memref<8x32xf32, #tpu.memory_space<vmem>>, vector<8x32xf32>,
    } else {
    }
    %c0 = arith.constant 0 : index
    %c0_1 = arith.constant 0 : index
    %3 = vector.load %arg1[%c0, %c0_1] : memref<64x16xf32, #tpu.memory_space<vmem>>, vector<64x16xf32>
    %c0_2 = arith.constant 0 : index
    %c0_3 = arith.constant 0 : index
    %4 = vector.load %arg2[%c0_2, %c0_3] : memref<16x128xf32, #tpu.memory_space<vmem>>, vector<16x128xf32>
    %cst = arith.constant dense<0.000000e+00> : vector<64x128xf32>
    %5 = tpu.matmul %3, %4, %cst {dimension_numbers = #tpu.dot_dimension_numbers<[1], [0], [0], [1], [0, 0, 1, 1], [], []>} : vector<64x16xf32>, vector<16x128xf32>, vector<64x128xf32> -> vector<64x128xf32>
    %c0_4 = arith.constant 0 : index
    %c0_5 = arith.constant 0 : index
    %6 = vector.load %arg4[%c0_4, %c0_5] : memref<1x128xf32, #tpu.memory_space<vmem>>, vector<1x128xf32>
    %7 = vector.broadcast %6 : vector<1x128xf32> to vector<64x128xf32>
    %8 = arith.addf %5, %7 : vector<64x128xf32>
    %c0_6 = arith.constant 0 : index
    %c0_7 = arith.constant 0 : index
    %9 = vector.load %arg12[%c0_6, %c0_7] : memref<64x128xf32, #tpu.memory_space<vmem>>, vector<64x128xf32>
    tpu.vector_store %arg12[%c0_6, %c0_7], %8 {strides = array<i32>} : memref<64x128xf32, #tpu.memory_space<vmem>>, vector<64x128xf32>,
    %c0_8 = arith.constant 0 : index
    %c0_9 = arith.constant 0 : index
    %10 = vector.load %arg3[%c0_8, %c0_9] : memref<32x128xf32, #tpu.memory_space<vmem>>, vector<32x128xf32>
    %c0_10 = arith.constant 0 : index
    %c0_11 = arith.constant 0 : index
    %11 = vector.load %arg10[%c0_10, %c0_11] : memref<8x32xf32, #tpu.memory_space<vmem>>, vector<8x32xf32>
    %c0_12 = arith.constant 0 : index
    %c0_13 = arith.constant 0 : index
    %12 = vector.load %arg11[%c0_12, %c0_13] : memref<8x32xf32, #tpu.memory_space<vmem>>, vector<8x32xf32>
    %c0_i32_14 = arith.constant 0 : i32
    %c8_i32 = arith.constant 8 : i32
    %13 = arith.muli %c0_i32_14, %c8_i32 : i32
    %14 = tpu.assume_multiple %13, 8 : i32
    %15 = arith.index_cast %14 : i32 to index
    %c0_15 = arith.constant 0 : index
    %16 = vector.load %arg12[%15, %c0_15] : memref<64x128xf32, #tpu.memory_space<vmem>>, vector<8x128xf32>
    %cst_16 = arith.constant dense<0.000000e+00> : vector<8x128xf32>
    %17 = tpu.matmul %11, %10, %cst_16 {dimension_numbers = #tpu.dot_dimension_numbers<[1], [0], [0], [1], [0, 0, 1, 1], [], []>} : vector<8x32xf32>, vector<32x128xf32>, vector<8x128xf32> -> vector<8x128xf32>
    %18 = arith.addf %16, %17 : vector<8x128xf32>
    %19 = vector.extract_strided_slice %18 {offsets = [0, 0], sizes = [8, 32], strides = [1, 1]} : vector<8x128xf32> to vector<8x32xf32>
    %20 = arith.negf %19 : vector<8x32xf32>
    %21 = math.exp %20 : vector<8x32xf32>
    %cst_17 = arith.constant 1.000000e+00 : f32
    %22 = vector.broadcast %cst_17 : f32 to vector<8x32xf32>
    %23 = arith.addf %22, %21 : vector<8x32xf32>
    %24 = arith.divf %22, %23 : vector<8x32xf32>
    %25 = vector.extract_strided_slice %18 {offsets = [0, 32], sizes = [8, 32], strides = [1, 1]} : vector<8x128xf32> to vector<8x32xf32>
    %26 = arith.negf %25 : vector<8x32xf32>
    %27 = math.exp %26 : vector<8x32xf32>
    %cst_18 = arith.constant 1.000000e+00 : f32
    %28 = vector.broadcast %cst_18 : f32 to vector<8x32xf32>
    %29 = arith.addf %28, %27 : vector<8x32xf32>
    %30 = arith.divf %28, %29 : vector<8x32xf32>
    %31 = vector.extract_strided_slice %18 {offsets = [0, 64], sizes = [8, 32], strides = [1, 1]} : vector<8x128xf32> to vector<8x32xf32>
    %32 = math.tanh %31 : vector<8x32xf32>
    %33 = vector.extract_strided_slice %18 {offsets = [0, 96], sizes = [8, 32], strides = [1, 1]} : vector<8x128xf32> to vector<8x32xf32>
    %34 = arith.negf %33 : vector<8x32xf32>
    %35 = math.exp %34 : vector<8x32xf32>
    %cst_19 = arith.constant 1.000000e+00 : f32
    %36 = vector.broadcast %cst_19 : f32 to vector<8x32xf32>
    %37 = arith.addf %36, %35 : vector<8x32xf32>
    %38 = arith.divf %36, %37 : vector<8x32xf32>
    %39 = arith.mulf %30, %12 : vector<8x32xf32>
    %40 = arith.mulf %24, %32 : vector<8x32xf32>
    %41 = arith.addf %39, %40 : vector<8x32xf32>
    %42 = math.tanh %41 : vector<8x32xf32>
    %43 = arith.mulf %38, %42 : vector<8x32xf32>
    %44 = arith.index_cast %14 : i32 to index
    %c0_20 = arith.constant 0 : index
    %45 = vector.load %arg13[%44, %c0_20] : memref<64x32xf32, #tpu.memory_space<vmem>>, vector<8x32xf32>
    tpu.vector_store %arg13[%44, %c0_20], %43 {strides = array<i32>} : memref<64x32xf32, #tpu.memory_space<vmem>>, vector<8x32xf32>,
    %c1_i32 = arith.constant 1 : i32
    %c8_i32_21 = arith.constant 8 : i32
    %46 = arith.muli %c1_i32, %c8_i32_21 : i32
    %47 = tpu.assume_multiple %46, 8 : i32
    %48 = arith.index_cast %47 : i32 to index
    %c0_22 = arith.constant 0 : index
    %49 = vector.load %arg12[%48, %c0_22] : memref<64x128xf32, #tpu.memory_space<vmem>>, vector<8x128xf32>
    %cst_23 = arith.constant dense<0.000000e+00> : vector<8x128xf32>
    %50 = tpu.matmul %43, %10, %cst_23 {dimension_numbers = #tpu.dot_dimension_numbers<[1], [0], [0], [1], [0, 0, 1, 1], [], []>} : vector<8x32xf32>, vector<32x128xf32>, vector<8x128xf32> -> vector<8x128xf32>
    %51 = arith.addf %49, %50 : vector<8x128xf32>
    %52 = vector.extract_strided_slice %51 {offsets = [0, 0], sizes = [8, 32], strides = [1, 1]} : vector<8x128xf32> to vector<8x32xf32>
    %53 = arith.negf %52 : vector<8x32xf32>
    %54 = math.exp %53 : vector<8x32xf32>
    %cst_24 = arith.constant 1.000000e+00 : f32
    %55 = vector.broadcast %cst_24 : f32 to vector<8x32xf32>
    %56 = arith.addf %55, %54 : vector<8x32xf32>
    %57 = arith.divf %55, %56 : vector<8x32xf32>
    %58 = vector.extract_strided_slice %51 {offsets = [0, 32], sizes = [8, 32], strides = [1, 1]} : vector<8x128xf32> to vector<8x32xf32>
    %59 = arith.negf %58 : vector<8x32xf32>
    %60 = math.exp %59 : vector<8x32xf32>
    %cst_25 = arith.constant 1.000000e+00 : f32
    %61 = vector.broadcast %cst_25 : f32 to vector<8x32xf32>
    %62 = arith.addf %61, %60 : vector<8x32xf32>
    %63 = arith.divf %61, %62 : vector<8x32xf32>
    %64 = vector.extract_strided_slice %51 {offsets = [0, 64], sizes = [8, 32], strides = [1, 1]} : vector<8x128xf32> to vector<8x32xf32>
    %65 = math.tanh %64 : vector<8x32xf32>
    %66 = vector.extract_strided_slice %51 {offsets = [0, 96], sizes = [8, 32], strides = [1, 1]} : vector<8x128xf32> to vector<8x32xf32>
    %67 = arith.negf %66 : vector<8x32xf32>
    %68 = math.exp %67 : vector<8x32xf32>
    %cst_26 = arith.constant 1.000000e+00 : f32
    %69 = vector.broadcast %cst_26 : f32 to vector<8x32xf32>
    %70 = arith.addf %69, %68 : vector<8x32xf32>
    %71 = arith.divf %69, %70 : vector<8x32xf32>
    %72 = arith.mulf %63, %41 : vector<8x32xf32>
    %73 = arith.mulf %57, %65 : vector<8x32xf32>
    %74 = arith.addf %72, %73 : vector<8x32xf32>
    %75 = math.tanh %74 : vector<8x32xf32>
    %76 = arith.mulf %71, %75 : vector<8x32xf32>
    %77 = arith.index_cast %47 : i32 to index
    %c0_27 = arith.constant 0 : index
    %78 = vector.load %arg13[%77, %c0_27] : memref<64x32xf32, #tpu.memory_space<vmem>>, vector<8x32xf32>
    tpu.vector_store %arg13[%77, %c0_27], %76 {strides = array<i32>} : memref<64x32xf32, #tpu.memory_space<vmem>>, vector<8x32xf32>,
    %c2_i32 = arith.constant 2 : i32
    %c8_i32_28 = arith.constant 8 : i32
    %79 = arith.muli %c2_i32, %c8_i32_28 : i32
    %80 = tpu.assume_multiple %79, 8 : i32
    %81 = arith.index_cast %80 : i32 to index
    %c0_29 = arith.constant 0 : index
    %82 = vector.load %arg12[%81, %c0_29] : memref<64x128xf32, #tpu.memory_space<vmem>>, vector<8x128xf32>
    %cst_30 = arith.constant dense<0.000000e+00> : vector<8x128xf32>
    %83 = tpu.matmul %76, %10, %cst_30 {dimension_numbers = #tpu.dot_dimension_numbers<[1], [0], [0], [1], [0, 0, 1, 1], [], []>} : vector<8x32xf32>, vector<32x128xf32>, vector<8x128xf32> -> vector<8x128xf32>
    %84 = arith.addf %82, %83 : vector<8x128xf32>
    %85 = vector.extract_strided_slice %84 {offsets = [0, 0], sizes = [8, 32], strides = [1, 1]} : vector<8x128xf32> to vector<8x32xf32>
    %86 = arith.negf %85 : vector<8x32xf32>
    %87 = math.exp %86 : vector<8x32xf32>
    %cst_31 = arith.constant 1.000000e+00 : f32
    %88 = vector.broadcast %cst_31 : f32 to vector<8x32xf32>
    %89 = arith.addf %88, %87 : vector<8x32xf32>
    %90 = arith.divf %88, %89 : vector<8x32xf32>
    %91 = vector.extract_strided_slice %84 {offsets = [0, 32], sizes = [8, 32], strides = [1, 1]} : vector<8x128xf32> to vector<8x32xf32>
    %92 = arith.negf %91 : vector<8x32xf32>
    %93 = math.exp %92 : vector<8x32xf32>
    %cst_32 = arith.constant 1.000000e+00 : f32
    %94 = vector.broadcast %cst_32 : f32 to vector<8x32xf32>
    %95 = arith.addf %94, %93 : vector<8x32xf32>
    %96 = arith.divf %94, %95 : vector<8x32xf32>
    %97 = vector.extract_strided_slice %84 {offsets = [0, 64], sizes = [8, 32], strides = [1, 1]} : vector<8x128xf32> to vector<8x32xf32>
    %98 = math.tanh %97 : vector<8x32xf32>
    %99 = vector.extract_strided_slice %84 {offsets = [0, 96], sizes = [8, 32], strides = [1, 1]} : vector<8x128xf32> to vector<8x32xf32>
    %100 = arith.negf %99 : vector<8x32xf32>
    %101 = math.exp %100 : vector<8x32xf32>
    %cst_33 = arith.constant 1.000000e+00 : f32
    %102 = vector.broadcast %cst_33 : f32 to vector<8x32xf32>
    %103 = arith.addf %102, %101 : vector<8x32xf32>
    %104 = arith.divf %102, %103 : vector<8x32xf32>
    %105 = arith.mulf %96, %74 : vector<8x32xf32>
    %106 = arith.mulf %90, %98 : vector<8x32xf32>
    %107 = arith.addf %105, %106 : vector<8x32xf32>
    %108 = math.tanh %107 : vector<8x32xf32>
    %109 = arith.mulf %104, %108 : vector<8x32xf32>
    %110 = arith.index_cast %80 : i32 to index
    %c0_34 = arith.constant 0 : index
    %111 = vector.load %arg13[%110, %c0_34] : memref<64x32xf32, #tpu.memory_space<vmem>>, vector<8x32xf32>
    tpu.vector_store %arg13[%110, %c0_34], %109 {strides = array<i32>} : memref<64x32xf32, #tpu.memory_space<vmem>>, vector<8x32xf32>,
    %c3_i32 = arith.constant 3 : i32
    %c8_i32_35 = arith.constant 8 : i32
    %112 = arith.muli %c3_i32, %c8_i32_35 : i32
    %113 = tpu.assume_multiple %112, 8 : i32
    %114 = arith.index_cast %113 : i32 to index
    %c0_36 = arith.constant 0 : index
    %115 = vector.load %arg12[%114, %c0_36] : memref<64x128xf32, #tpu.memory_space<vmem>>, vector<8x128xf32>
    %cst_37 = arith.constant dense<0.000000e+00> : vector<8x128xf32>
    %116 = tpu.matmul %109, %10, %cst_37 {dimension_numbers = #tpu.dot_dimension_numbers<[1], [0], [0], [1], [0, 0, 1, 1], [], []>} : vector<8x32xf32>, vector<32x128xf32>, vector<8x128xf32> -> vector<8x128xf32>
    %117 = arith.addf %115, %116 : vector<8x128xf32>
    %118 = vector.extract_strided_slice %117 {offsets = [0, 0], sizes = [8, 32], strides = [1, 1]} : vector<8x128xf32> to vector<8x32xf32>
    %119 = arith.negf %118 : vector<8x32xf32>
    %120 = math.exp %119 : vector<8x32xf32>
    %cst_38 = arith.constant 1.000000e+00 : f32
    %121 = vector.broadcast %cst_38 : f32 to vector<8x32xf32>
    %122 = arith.addf %121, %120 : vector<8x32xf32>
    %123 = arith.divf %121, %122 : vector<8x32xf32>
    %124 = vector.extract_strided_slice %117 {offsets = [0, 32], sizes = [8, 32], strides = [1, 1]} : vector<8x128xf32> to vector<8x32xf32>
    %125 = arith.negf %124 : vector<8x32xf32>
    %126 = math.exp %125 : vector<8x32xf32>
    %cst_39 = arith.constant 1.000000e+00 : f32
    %127 = vector.broadcast %cst_39 : f32 to vector<8x32xf32>
    %128 = arith.addf %127, %126 : vector<8x32xf32>
    %129 = arith.divf %127, %128 : vector<8x32xf32>
    %130 = vector.extract_strided_slice %117 {offsets = [0, 64], sizes = [8, 32], strides = [1, 1]} : vector<8x128xf32> to vector<8x32xf32>
    %131 = math.tanh %130 : vector<8x32xf32>
    %132 = vector.extract_strided_slice %117 {offsets = [0, 96], sizes = [8, 32], strides = [1, 1]} : vector<8x128xf32> to vector<8x32xf32>
    %133 = arith.negf %132 : vector<8x32xf32>
    %134 = math.exp %133 : vector<8x32xf32>
    %cst_40 = arith.constant 1.000000e+00 : f32
    %135 = vector.broadcast %cst_40 : f32 to vector<8x32xf32>
    %136 = arith.addf %135, %134 : vector<8x32xf32>
    %137 = arith.divf %135, %136 : vector<8x32xf32>
    %138 = arith.mulf %129, %107 : vector<8x32xf32>
    %139 = arith.mulf %123, %131 : vector<8x32xf32>
    %140 = arith.addf %138, %139 : vector<8x32xf32>
    %141 = math.tanh %140 : vector<8x32xf32>
    %142 = arith.mulf %137, %141 : vector<8x32xf32>
    %143 = arith.index_cast %113 : i32 to index
    %c0_41 = arith.constant 0 : index
    %144 = vector.load %arg13[%143, %c0_41] : memref<64x32xf32, #tpu.memory_space<vmem>>, vector<8x32xf32>
    tpu.vector_store %arg13[%143, %c0_41], %142 {strides = array<i32>} : memref<64x32xf32, #tpu.memory_space<vmem>>, vector<8x32xf32>,
    %c4_i32 = arith.constant 4 : i32
    %c8_i32_42 = arith.constant 8 : i32
    %145 = arith.muli %c4_i32, %c8_i32_42 : i32
    %146 = tpu.assume_multiple %145, 8 : i32
    %147 = arith.index_cast %146 : i32 to index
    %c0_43 = arith.constant 0 : index
    %148 = vector.load %arg12[%147, %c0_43] : memref<64x128xf32, #tpu.memory_space<vmem>>, vector<8x128xf32>
    %cst_44 = arith.constant dense<0.000000e+00> : vector<8x128xf32>
    %149 = tpu.matmul %142, %10, %cst_44 {dimension_numbers = #tpu.dot_dimension_numbers<[1], [0], [0], [1], [0, 0, 1, 1], [], []>} : vector<8x32xf32>, vector<32x128xf32>, vector<8x128xf32> -> vector<8x128xf32>
    %150 = arith.addf %148, %149 : vector<8x128xf32>
    %151 = vector.extract_strided_slice %150 {offsets = [0, 0], sizes = [8, 32], strides = [1, 1]} : vector<8x128xf32> to vector<8x32xf32>
    %152 = arith.negf %151 : vector<8x32xf32>
    %153 = math.exp %152 : vector<8x32xf32>
    %cst_45 = arith.constant 1.000000e+00 : f32
    %154 = vector.broadcast %cst_45 : f32 to vector<8x32xf32>
    %155 = arith.addf %154, %153 : vector<8x32xf32>
    %156 = arith.divf %154, %155 : vector<8x32xf32>
    %157 = vector.extract_strided_slice %150 {offsets = [0, 32], sizes = [8, 32], strides = [1, 1]} : vector<8x128xf32> to vector<8x32xf32>
    %158 = arith.negf %157 : vector<8x32xf32>
    %159 = math.exp %158 : vector<8x32xf32>
    %cst_46 = arith.constant 1.000000e+00 : f32
    %160 = vector.broadcast %cst_46 : f32 to vector<8x32xf32>
    %161 = arith.addf %160, %159 : vector<8x32xf32>
    %162 = arith.divf %160, %161 : vector<8x32xf32>
    %163 = vector.extract_strided_slice %150 {offsets = [0, 64], sizes = [8, 32], strides = [1, 1]} : vector<8x128xf32> to vector<8x32xf32>
    %164 = math.tanh %163 : vector<8x32xf32>
    %165 = vector.extract_strided_slice %150 {offsets = [0, 96], sizes = [8, 32], strides = [1, 1]} : vector<8x128xf32> to vector<8x32xf32>
    %166 = arith.negf %165 : vector<8x32xf32>
    %167 = math.exp %166 : vector<8x32xf32>
    %cst_47 = arith.constant 1.000000e+00 : f32
    %168 = vector.broadcast %cst_47 : f32 to vector<8x32xf32>
    %169 = arith.addf %168, %167 : vector<8x32xf32>
    %170 = arith.divf %168, %169 : vector<8x32xf32>
    %171 = arith.mulf %162, %140 : vector<8x32xf32>
    %172 = arith.mulf %156, %164 : vector<8x32xf32>
    %173 = arith.addf %171, %172 : vector<8x32xf32>
    %174 = math.tanh %173 : vector<8x32xf32>
    %175 = arith.mulf %170, %174 : vector<8x32xf32>
    %176 = arith.index_cast %146 : i32 to index
    %c0_48 = arith.constant 0 : index
    %177 = vector.load %arg13[%176, %c0_48] : memref<64x32xf32, #tpu.memory_space<vmem>>, vector<8x32xf32>
    tpu.vector_store %arg13[%176, %c0_48], %175 {strides = array<i32>} : memref<64x32xf32, #tpu.memory_space<vmem>>, vector<8x32xf32>,
    %c5_i32 = arith.constant 5 : i32
    %c8_i32_49 = arith.constant 8 : i32
    %178 = arith.muli %c5_i32, %c8_i32_49 : i32
    %179 = tpu.assume_multiple %178, 8 : i32
    %180 = arith.index_cast %179 : i32 to index
    %c0_50 = arith.constant 0 : index
    %181 = vector.load %arg12[%180, %c0_50] : memref<64x128xf32, #tpu.memory_space<vmem>>, vector<8x128xf32>
    %cst_51 = arith.constant dense<0.000000e+00> : vector<8x128xf32>
    %182 = tpu.matmul %175, %10, %cst_51 {dimension_numbers = #tpu.dot_dimension_numbers<[1], [0], [0], [1], [0, 0, 1, 1], [], []>} : vector<8x32xf32>, vector<32x128xf32>, vector<8x128xf32> -> vector<8x128xf32>
    %183 = arith.addf %181, %182 : vector<8x128xf32>
    %184 = vector.extract_strided_slice %183 {offsets = [0, 0], sizes = [8, 32], strides = [1, 1]} : vector<8x128xf32> to vector<8x32xf32>
    %185 = arith.negf %184 : vector<8x32xf32>
    %186 = math.exp %185 : vector<8x32xf32>
    %cst_52 = arith.constant 1.000000e+00 : f32
    %187 = vector.broadcast %cst_52 : f32 to vector<8x32xf32>
    %188 = arith.addf %187, %186 : vector<8x32xf32>
    %189 = arith.divf %187, %188 : vector<8x32xf32>
    %190 = vector.extract_strided_slice %183 {offsets = [0, 32], sizes = [8, 32], strides = [1, 1]} : vector<8x128xf32> to vector<8x32xf32>
    %191 = arith.negf %190 : vector<8x32xf32>
    %192 = math.exp %191 : vector<8x32xf32>
    %cst_53 = arith.constant 1.000000e+00 : f32
    %193 = vector.broadcast %cst_53 : f32 to vector<8x32xf32>
    %194 = arith.addf %193, %192 : vector<8x32xf32>
    %195 = arith.divf %193, %194 : vector<8x32xf32>
    %196 = vector.extract_strided_slice %183 {offsets = [0, 64], sizes = [8, 32], strides = [1, 1]} : vector<8x128xf32> to vector<8x32xf32>
    %197 = math.tanh %196 : vector<8x32xf32>
    %198 = vector.extract_strided_slice %183 {offsets = [0, 96], sizes = [8, 32], strides = [1, 1]} : vector<8x128xf32> to vector<8x32xf32>
    %199 = arith.negf %198 : vector<8x32xf32>
    %200 = math.exp %199 : vector<8x32xf32>
    %cst_54 = arith.constant 1.000000e+00 : f32
    %201 = vector.broadcast %cst_54 : f32 to vector<8x32xf32>
    %202 = arith.addf %201, %200 : vector<8x32xf32>
    %203 = arith.divf %201, %202 : vector<8x32xf32>
    %204 = arith.mulf %195, %173 : vector<8x32xf32>
    %205 = arith.mulf %189, %197 : vector<8x32xf32>
    %206 = arith.addf %204, %205 : vector<8x32xf32>
    %207 = math.tanh %206 : vector<8x32xf32>
    %208 = arith.mulf %203, %207 : vector<8x32xf32>
    %209 = arith.index_cast %179 : i32 to index
    %c0_55 = arith.constant 0 : index
    %210 = vector.load %arg13[%209, %c0_55] : memref<64x32xf32, #tpu.memory_space<vmem>>, vector<8x32xf32>
    tpu.vector_store %arg13[%209, %c0_55], %208 {strides = array<i32>} : memref<64x32xf32, #tpu.memory_space<vmem>>, vector<8x32xf32>,
    %c6_i32 = arith.constant 6 : i32
    %c8_i32_56 = arith.constant 8 : i32
    %211 = arith.muli %c6_i32, %c8_i32_56 : i32
    %212 = tpu.assume_multiple %211, 8 : i32
    %213 = arith.index_cast %212 : i32 to index
    %c0_57 = arith.constant 0 : index
    %214 = vector.load %arg12[%213, %c0_57] : memref<64x128xf32, #tpu.memory_space<vmem>>, vector<8x128xf32>
    %cst_58 = arith.constant dense<0.000000e+00> : vector<8x128xf32>
    %215 = tpu.matmul %208, %10, %cst_58 {dimension_numbers = #tpu.dot_dimension_numbers<[1], [0], [0], [1], [0, 0, 1, 1], [], []>} : vector<8x32xf32>, vector<32x128xf32>, vector<8x128xf32> -> vector<8x128xf32>
    %216 = arith.addf %214, %215 : vector<8x128xf32>
    %217 = vector.extract_strided_slice %216 {offsets = [0, 0], sizes = [8, 32], strides = [1, 1]} : vector<8x128xf32> to vector<8x32xf32>
    %218 = arith.negf %217 : vector<8x32xf32>
    %219 = math.exp %218 : vector<8x32xf32>
    %cst_59 = arith.constant 1.000000e+00 : f32
    %220 = vector.broadcast %cst_59 : f32 to vector<8x32xf32>
    %221 = arith.addf %220, %219 : vector<8x32xf32>
    %222 = arith.divf %220, %221 : vector<8x32xf32>
    %223 = vector.extract_strided_slice %216 {offsets = [0, 32], sizes = [8, 32], strides = [1, 1]} : vector<8x128xf32> to vector<8x32xf32>
    %224 = arith.negf %223 : vector<8x32xf32>
    %225 = math.exp %224 : vector<8x32xf32>
    %cst_60 = arith.constant 1.000000e+00 : f32
    %226 = vector.broadcast %cst_60 : f32 to vector<8x32xf32>
    %227 = arith.addf %226, %225 : vector<8x32xf32>
    %228 = arith.divf %226, %227 : vector<8x32xf32>
    %229 = vector.extract_strided_slice %216 {offsets = [0, 64], sizes = [8, 32], strides = [1, 1]} : vector<8x128xf32> to vector<8x32xf32>
    %230 = math.tanh %229 : vector<8x32xf32>
    %231 = vector.extract_strided_slice %216 {offsets = [0, 96], sizes = [8, 32], strides = [1, 1]} : vector<8x128xf32> to vector<8x32xf32>
    %232 = arith.negf %231 : vector<8x32xf32>
    %233 = math.exp %232 : vector<8x32xf32>
    %cst_61 = arith.constant 1.000000e+00 : f32
    %234 = vector.broadcast %cst_61 : f32 to vector<8x32xf32>
    %235 = arith.addf %234, %233 : vector<8x32xf32>
    %236 = arith.divf %234, %235 : vector<8x32xf32>
    %237 = arith.mulf %228, %206 : vector<8x32xf32>
    %238 = arith.mulf %222, %230 : vector<8x32xf32>
    %239 = arith.addf %237, %238 : vector<8x32xf32>
    %240 = math.tanh %239 : vector<8x32xf32>
    %241 = arith.mulf %236, %240 : vector<8x32xf32>
    %242 = arith.index_cast %212 : i32 to index
    %c0_62 = arith.constant 0 : index
    %243 = vector.load %arg13[%242, %c0_62] : memref<64x32xf32, #tpu.memory_space<vmem>>, vector<8x32xf32>
    tpu.vector_store %arg13[%242, %c0_62], %241 {strides = array<i32>} : memref<64x32xf32, #tpu.memory_space<vmem>>, vector<8x32xf32>,
    %c7_i32 = arith.constant 7 : i32
    %c8_i32_63 = arith.constant 8 : i32
    %244 = arith.muli %c7_i32, %c8_i32_63 : i32
    %245 = tpu.assume_multiple %244, 8 : i32
    %246 = arith.index_cast %245 : i32 to index
    %c0_64 = arith.constant 0 : index
    %247 = vector.load %arg12[%246, %c0_64] : memref<64x128xf32, #tpu.memory_space<vmem>>, vector<8x128xf32>
    %cst_65 = arith.constant dense<0.000000e+00> : vector<8x128xf32>
    %248 = tpu.matmul %241, %10, %cst_65 {dimension_numbers = #tpu.dot_dimension_numbers<[1], [0], [0], [1], [0, 0, 1, 1], [], []>} : vector<8x32xf32>, vector<32x128xf32>, vector<8x128xf32> -> vector<8x128xf32>
    %249 = arith.addf %247, %248 : vector<8x128xf32>
    %250 = vector.extract_strided_slice %249 {offsets = [0, 0], sizes = [8, 32], strides = [1, 1]} : vector<8x128xf32> to vector<8x32xf32>
    %251 = arith.negf %250 : vector<8x32xf32>
    %252 = math.exp %251 : vector<8x32xf32>
    %cst_66 = arith.constant 1.000000e+00 : f32
    %253 = vector.broadcast %cst_66 : f32 to vector<8x32xf32>
    %254 = arith.addf %253, %252 : vector<8x32xf32>
    %255 = arith.divf %253, %254 : vector<8x32xf32>
    %256 = vector.extract_strided_slice %249 {offsets = [0, 32], sizes = [8, 32], strides = [1, 1]} : vector<8x128xf32> to vector<8x32xf32>
    %257 = arith.negf %256 : vector<8x32xf32>
    %258 = math.exp %257 : vector<8x32xf32>
    %cst_67 = arith.constant 1.000000e+00 : f32
    %259 = vector.broadcast %cst_67 : f32 to vector<8x32xf32>
    %260 = arith.addf %259, %258 : vector<8x32xf32>
    %261 = arith.divf %259, %260 : vector<8x32xf32>
    %262 = vector.extract_strided_slice %249 {offsets = [0, 64], sizes = [8, 32], strides = [1, 1]} : vector<8x128xf32> to vector<8x32xf32>
    %263 = math.tanh %262 : vector<8x32xf32>
    %264 = vector.extract_strided_slice %249 {offsets = [0, 96], sizes = [8, 32], strides = [1, 1]} : vector<8x128xf32> to vector<8x32xf32>
    %265 = arith.negf %264 : vector<8x32xf32>
    %266 = math.exp %265 : vector<8x32xf32>
    %cst_68 = arith.constant 1.000000e+00 : f32
    %267 = vector.broadcast %cst_68 : f32 to vector<8x32xf32>
    %268 = arith.addf %267, %266 : vector<8x32xf32>
    %269 = arith.divf %267, %268 : vector<8x32xf32>
    %270 = arith.mulf %261, %239 : vector<8x32xf32>
    %271 = arith.mulf %255, %263 : vector<8x32xf32>
    %272 = arith.addf %270, %271 : vector<8x32xf32>
    %273 = math.tanh %272 : vector<8x32xf32>
    %274 = arith.mulf %269, %273 : vector<8x32xf32>
    %275 = arith.index_cast %245 : i32 to index
    %c0_69 = arith.constant 0 : index
    %276 = vector.load %arg13[%275, %c0_69] : memref<64x32xf32, #tpu.memory_space<vmem>>, vector<8x32xf32>
    tpu.vector_store %arg13[%275, %c0_69], %274 {strides = array<i32>} : memref<64x32xf32, #tpu.memory_space<vmem>>, vector<8x32xf32>,
    %c8_i32_70 = arith.constant 8 : i32
    %c0_71 = arith.constant 0 : index
    %c0_72 = arith.constant 0 : index
    %277 = vector.load %arg10[%c0_71, %c0_72] : memref<8x32xf32, #tpu.memory_space<vmem>>, vector<8x32xf32>
    tpu.vector_store %arg10[%c0_71, %c0_72], %274 {strides = array<i32>} : memref<8x32xf32, #tpu.memory_space<vmem>>, vector<8x32xf32>,
    %c0_73 = arith.constant 0 : index
    %c0_74 = arith.constant 0 : index
    %278 = vector.load %arg11[%c0_73, %c0_74] : memref<8x32xf32, #tpu.memory_space<vmem>>, vector<8x32xf32>
    tpu.vector_store %arg11[%c0_73, %c0_74], %272 {strides = array<i32>} : memref<8x32xf32, #tpu.memory_space<vmem>>, vector<8x32xf32>,
    %c0_75 = arith.constant 0 : index
    %c0_76 = arith.constant 0 : index
    %279 = vector.load %arg13[%c0_75, %c0_76] : memref<64x32xf32, #tpu.memory_space<vmem>>, vector<64x32xf32>
    %c0_77 = arith.constant 0 : index
    %c0_78 = arith.constant 0 : index
    %280 = vector.load %arg5[%c0_77, %c0_78] : memref<32x64xf32, #tpu.memory_space<vmem>>, vector<32x64xf32>
    %c0_79 = arith.constant 0 : index
    %c0_80 = arith.constant 0 : index
    %281 = vector.load %arg6[%c0_79, %c0_80] : memref<1x64xf32, #tpu.memory_space<vmem>>, vector<1x64xf32>
    %cst_81 = arith.constant dense<0.000000e+00> : vector<64x64xf32>
    %282 = tpu.matmul %279, %280, %cst_81 {dimension_numbers = #tpu.dot_dimension_numbers<[1], [0], [0], [1], [0, 0, 1, 1], [], []>} : vector<64x32xf32>, vector<32x64xf32>, vector<64x64xf32> -> vector<64x64xf32>
    %283 = vector.broadcast %281 : vector<1x64xf32> to vector<64x64xf32>
    %284 = arith.addf %282, %283 : vector<64x64xf32>
    %cst_82 = arith.constant 0.000000e+00 : f32
    %285 = vector.broadcast %cst_82 : f32 to vector<64x64xf32>
    %286 = arith.maximumf %284, %285 : vector<64x64xf32>
    %c0_83 = arith.constant 0 : index
    %c0_84 = arith.constant 0 : index
    %287 = vector.load %arg7[%c0_83, %c0_84] : memref<64x128xf32, #tpu.memory_space<vmem>>, vector<64x128xf32>
    %c0_85 = arith.constant 0 : index
    %c0_86 = arith.constant 0 : index
    %288 = vector.load %arg8[%c0_85, %c0_86] : memref<1x128xf32, #tpu.memory_space<vmem>>, vector<1x128xf32>
    %cst_87 = arith.constant dense<0.000000e+00> : vector<64x128xf32>
    %289 = tpu.matmul %286, %287, %cst_87 {dimension_numbers = #tpu.dot_dimension_numbers<[1], [0], [0], [1], [0, 0, 1, 1], [], []>} : vector<64x64xf32>, vector<64x128xf32>, vector<64x128xf32> -> vector<64x128xf32>
    %290 = vector.broadcast %288 : vector<1x128xf32> to vector<64x128xf32>
    %291 = arith.addf %289, %290 : vector<64x128xf32>
    %c0_88 = arith.constant 0 : index
    %c0_89 = arith.constant 0 : index
    %292 = vector.load %arg9[%c0_88, %c0_89] : memref<64x128xf32, #tpu.memory_space<vmem>>, vector<64x128xf32>
    tpu.vector_store %arg9[%c0_88, %c0_89], %291 {strides = array<i32>} : memref<64x128xf32, #tpu.memory_space<vmem>>, vector<64x128xf32>,
    return
  }
  func.func @transform_0(%arg0: i32) -> (i32, i32) {
    %c0_i32 = arith.constant 0 : i32
    %c0_i32_0 = arith.constant 0 : i32
    return %arg0, %c0_i32 : i32, i32
  }
  func.func @transform_1(%arg0: i32) -> (i32, i32) {
    %c0_i32 = arith.constant 0 : i32
    %c0_i32_0 = arith.constant 0 : i32
    %c0_i32_1 = arith.constant 0 : i32
    return %c0_i32, %c0_i32_0 : i32, i32
  }
  func.func @transform_2(%arg0: i32) -> (i32, i32) {
    %c0_i32 = arith.constant 0 : i32
    %c0_i32_0 = arith.constant 0 : i32
    %c0_i32_1 = arith.constant 0 : i32
    return %c0_i32, %c0_i32_0 : i32, i32
  }
  func.func @transform_3(%arg0: i32) -> (i32, i32) {
    %c0_i32 = arith.constant 0 : i32
    %c0_i32_0 = arith.constant 0 : i32
    %c0_i32_1 = arith.constant 0 : i32
    return %c0_i32, %c0_i32_0 : i32, i32
  }
  func.func @transform_4(%arg0: i32) -> (i32, i32) {
    %c0_i32 = arith.constant 0 : i32
    %c0_i32_0 = arith.constant 0 : i32
    %c0_i32_1 = arith.constant 0 : i32
    return %c0_i32, %c0_i32_0 : i32, i32
  }
  func.func @transform_5(%arg0: i32) -> (i32, i32) {
    %c0_i32 = arith.constant 0 : i32
    %c0_i32_0 = arith.constant 0 : i32
    %c0_i32_1 = arith.constant 0 : i32
    return %c0_i32, %c0_i32_0 : i32, i32
  }
  func.func @transform_6(%arg0: i32) -> (i32, i32) {
    %c0_i32 = arith.constant 0 : i32
    %c0_i32_0 = arith.constant 0 : i32
    %c0_i32_1 = arith.constant 0 : i32
    return %c0_i32, %c0_i32_0 : i32, i32
  }
  func.func @transform_7(%arg0: i32) -> (i32, i32) {
    %c0_i32 = arith.constant 0 : i32
    %c0_i32_0 = arith.constant 0 : i32
    %c0_i32_1 = arith.constant 0 : i32
    return %c0_i32, %c0_i32_0 : i32, i32
  }
  func.func @transform_8(%arg0: i32) -> (i32, i32) {
    %c0_i32 = arith.constant 0 : i32
    %c0_i32_0 = arith.constant 0 : i32
    return %arg0, %c0_i32 : i32, i32
  }
}

</mosaic_0001>

<llo_original>
// kernel: tpu_custom_call.1
$region0: #{tpu_custom_call.1}
  #allocation0 [shape = 'u32[]', space=smem, size = 0x4, offset = 0x4, fixed_abs, tag = 'smem constant byte address 0x4 - core index']
  #allocation1 [shape = 'u32[144,128]{1,0:T(1,128)}', space=vmem, size = 0x12000, scoped, tag = 'internal scratch']
  #allocation2 [shape = 'f32[8,32]{1,0:T(8,128)}', space=vmem, size = 0x1000, scoped, tag = 'scratch operand']
  #allocation3 [shape = 'f32[8,32]{1,0:T(8,128)}', space=vmem, size = 0x1000, scoped, tag = 'scratch operand']
  #allocation4 [shape = 'f32[64,128]{1,0:T(8,128)}', space=vmem, size = 0x8000, scoped, tag = 'scratch operand']
  #allocation5 [shape = 'f32[64,32]{1,0:T(8,128)}', space=vmem, size = 0x8000, scoped, tag = 'scratch operand']
  %s0 = inlined_call_operand.vmem [shape: f32[64,16], index: 0, kind: input, shape index: {}]
  %s1 = inlined_call_operand.hbm [shape: f32[16,128], index: 1, kind: input, shape index: {}]
  %s2 = inlined_call_operand.vmem [shape: f32[32,128], index: 2, kind: input, shape index: {}]
  %s3 = inlined_call_operand.vmem [shape: f32[1,128], index: 3, kind: input, shape index: {}]
  %s4 = inlined_call_operand.hbm [shape: f32[32,64], index: 4, kind: input, shape index: {}]
  %s5 = inlined_call_operand.vmem [shape: f32[1,64], index: 5, kind: input, shape index: {}]
  %s6 = inlined_call_operand.vmem [shape: f32[64,128], index: 6, kind: input, shape index: {}]
  %s7 = inlined_call_operand.vmem [shape: f32[1,128], index: 7, kind: input, shape index: {}]
  %s8 = inlined_call_operand.hbm [shape: f32[64,128], index: 8, kind: output, shape index: {}]
  %s9 = sld [smem:[#allocation0]]
  $region54: #{tpu_custom_call.1} parent=0
    _
  %s11 = ssub.s32 1, %s9
  %s12 = scalar_select 0, %s11, %s9
  $region1: #{tpu_custom_call.1} parent=0
    #allocation6 [shape = 'u8[8192]{0}', space=vmem, size = 0x2000, scoped, tag = 'input window, operand 1, single buffered']
    #allocation7 [shape = 's32[1]{0}', space=sflag, size = 0x4, scoped, tag = 'scoped memory for tpu_custom_call.1']
    #allocation8 [shape = 's32[1]{0}', space=sflag, size = 0x4, scoped, tag = 'scoped memory for tpu_custom_call.1']
    #allocation9 [shape = 'u8[16384]{0}', space=vmem, size = 0x4000, scoped, tag = 'input window, operand 4, single buffered']
    #allocation10 [shape = 's32[1]{0}', space=sflag, size = 0x4, scoped, tag = 'scoped memory for tpu_custom_call.1']
    #allocation11 [shape = 'u8[32768]{0}', space=vmem, size = 0x8000, scoped, tag = 'output window, operand 0, single buffered']
    %13 = vsyncpa [#allocation7], 0
    %14 = vsyncpa [#allocation10], 0
    %15 = vsyncpa [#allocation8], 0
    // Predicated region
    $region2: #{tpu_custom_call.1} parent=1 // pred_check
      _
    $region3: #{tpu_custom_call.1} parent=1 // pred_check_branch
      %17 = sbr.rel (0) target = $region5
    $region4: #{tpu_custom_call.1} parent=1 // pred_region
      _
    $region5: #{tpu_custom_call.1} parent=1 // pred_fallthru
      _
    // Predicated region
    $region6: #{tpu_custom_call.1} parent=1 // pred_check
      _
    $region7: #{tpu_custom_call.1} parent=1 // pred_check_branch
      %19 = sbr.rel (0) target = $region9
    $region8: #{tpu_custom_call.1} parent=1 // pred_region
      %s21 = ssub.s32 256, 256
      %22 = vsyncadd [#allocation7], %s21
      %s23 = sshll.u32 [#allocation6], 4
      %s24 = int_to_ptr.vmem [resolvable:$true] %s23
      %29 = dma.hbm_to_vmem [thread:$0]  %s1, 256, %s24, [#allocation7], 128, 128, 8
    $region9: #{tpu_custom_call.1} parent=1 // pred_fallthru
      _
    // Predicated region
    $region10: #{tpu_custom_call.1} parent=1 // pred_check
      _
    $region11: #{tpu_custom_call.1} parent=1 // pred_check_branch
      %31 = sbr.rel (0) target = $region13
    $region12: #{tpu_custom_call.1} parent=1 // pred_region
      _
    $region13: #{tpu_custom_call.1} parent=1 // pred_fallthru
      _
    // Predicated region
    $region14: #{tpu_custom_call.1} parent=1 // pred_check
      _
    $region15: #{tpu_custom_call.1} parent=1 // pred_check_branch
      %33 = sbr.rel (0) target = $region17
    $region16: #{tpu_custom_call.1} parent=1 // pred_region
      _
    $region17: #{tpu_custom_call.1} parent=1 // pred_fallthru
      _
    // Predicated region
    $region18: #{tpu_custom_call.1} parent=1 // pred_check
      _
    $region19: #{tpu_custom_call.1} parent=1 // pred_check_branch
      %35 = sbr.rel (0) target = $region21
    $region20: #{tpu_custom_call.1} parent=1 // pred_region
      %s37 = ssub.s32 512, 512
      %38 = vsyncadd [#allocation10], %s37
      %s39 = sshll.u32 [#allocation9], 4
      %s40 = int_to_ptr.vmem [resolvable:$true] %s39
      %45 = dma.hbm_to_vmem [thread:$0]  %s4, 512, %s40, [#allocation10], 128, 128, 8
    $region21: #{tpu_custom_call.1} parent=1 // pred_fallthru
      _
    // Predicated region
    $region22: #{tpu_custom_call.1} parent=1 // pred_check
      _
    $region23: #{tpu_custom_call.1} parent=1 // pred_check_branch
      %47 = sbr.rel (0) target = $region25
    $region24: #{tpu_custom_call.1} parent=1 // pred_region
      _
    $region25: #{tpu_custom_call.1} parent=1 // pred_fallthru
      _
    // Predicated region
    $region26: #{tpu_custom_call.1} parent=1 // pred_check
      _
    $region27: #{tpu_custom_call.1} parent=1 // pred_check_branch
      %49 = sbr.rel (0) target = $region29
    $region28: #{tpu_custom_call.1} parent=1 // pred_region
      _
    $region29: #{tpu_custom_call.1} parent=1 // pred_fallthru
      _
    // Predicated region
    $region30: #{tpu_custom_call.1} parent=1 // pred_check
      _
    $region31: #{tpu_custom_call.1} parent=1 // pred_check_branch
      %51 = sbr.rel (0) target = $region33
    $region32: #{tpu_custom_call.1} parent=1 // pred_region
      _
    $region33: #{tpu_custom_call.1} parent=1 // pred_fallthru
      _
    // Predicated region
    $region34: #{tpu_custom_call.1} parent=1 // pred_check
      _
    $region35: #{tpu_custom_call.1} parent=1 // pred_check_branch
      %53 = sbr.rel (0) target = $region37
    $region36: #{tpu_custom_call.1} parent=1 // pred_region
      %54 = dma.done [#allocation7], 256
    $region37: #{tpu_custom_call.1} parent=1 // pred_fallthru
      _
    // Predicated region
    $region38: #{tpu_custom_call.1} parent=1 // pred_check
      _
    $region39: #{tpu_custom_call.1} parent=1 // pred_check_branch
      %56 = sbr.rel (0) target = $region41
    $region40: #{tpu_custom_call.1} parent=1 // pred_region
      %57 = dma.done [#allocation10], 512
    $region41: #{tpu_custom_call.1} parent=1 // pred_fallthru
      _
    %p58 = scmp.eq.s32.totalorder 0, 0
    // Predicated region
    $region42: #{tpu_custom_call.1} parent=1 // pred_check
      %p59 = pneg %p58
    $region43: #{tpu_custom_call.1} parent=1 // pred_check_branch
      %61 = sbr.rel (%p59) target = $region45
    $region44: #{tpu_custom_call.1} parent=1 // pred_region
      %vm62 = vcmask 261120
      %63 = vst.msk [vmem:[#allocation2] sm:$0xff] %vm62, 0.0
      %64 = vst.msk [vmem:[#allocation3] sm:$0xff] %vm62, 0.0
    $region45: #{tpu_custom_call.1} parent=1 // pred_fallthru
      _
    %v65 = vld [vmem:[%s0] sm:$0xff]
    %v66 = vld [vmem:[%s0 + $0x8] sm:$0xff]
    %v67 = vld [vmem:[%s0 + $0x10] sm:$0xff]
    %v68 = vld [vmem:[%s0 + $0x18] sm:$0xff]
    %v69 = vld [vmem:[%s0 + $0x20] sm:$0xff]
    %v70 = vld [vmem:[%s0 + $0x28] sm:$0xff]
    %v71 = vld [vmem:[%s0 + $0x30] sm:$0xff]
    %v72 = vld [vmem:[%s0 + $0x38] sm:$0xff]
    %v73 = vld [vmem:[#allocation6] sm:$0xff]
    %v74 = vld [vmem:[#allocation6 + $0x8] sm:$0xff]
    %v75 = vld [vmem:[%s3] sm:$0x1]
    %v77 = vlaneseq
    %v78 = vshrl.u32 %v77, 7
    %v79 = vsub.s32 0, %v78
    %v80 = vrot.slane %v75, %v79
    %vm82 = vcmask 130048
    %v84 = vsel %vm82, %v65, 0
    %v87 = vsel %vm82, %v66, 0
    %v90 = vsel %vm82, %v67, 0
    %v93 = vsel %vm82, %v68, 0
    %v96 = vsel %vm82, %v69, 0
    %v99 = vsel %vm82, %v70, 0
    %v102 = vsel %vm82, %v71, 0
    %v105 = vsel %vm82, %v72, 0
    %107 = vmatprep.subr.mxu0 0.0
    %108 = vmatpush1.msra.mxu0 %v73
    %109 = vmatprep.subr.mxu0 0.0
    %110 = vmatpush1.msra.mxu0 %v74
    %111 = vmatprep.subr.mxu0 0.0
    %112 = vmatpush1.msra.mxu0 0.0
    %113 = vmatprep.subr.mxu0 0.0
    %114 = vmatpush1.msra.mxu0 0.0
    %115 = vmatprep.subr.mxu0 0.0
    %116 = vmatpush1.msra.mxu0 0.0
    %117 = vmatprep.subr.mxu0 0.0
    %118 = vmatpush1.msra.mxu0 0.0
    %119 = vmatprep.subr.mxu0 0.0
    %120 = vmatpush1.msra.mxu0 0.0
    %121 = vmatprep.subr.mxu0 0.0
    %122 = vmatpush1.msra.mxu0 0.0
    %123 = vmatprep.subr.mxu0 0.0
    %124 = vmatpush1.msra.mxu0 0.0
    %125 = vmatprep.subr.mxu0 0.0
    %126 = vmatpush1.msra.mxu0 0.0
    %127 = vmatprep.subr.mxu0 0.0
    %128 = vmatpush1.msra.mxu0 0.0
    %129 = vmatprep.subr.mxu0 0.0
    %130 = vmatpush1.msra.mxu0 0.0
    %131 = vmatprep.subr.mxu0 0.0
    %132 = vmatpush1.msra.mxu0 0.0
    %133 = vmatprep.subr.mxu0 0.0
    %134 = vmatpush1.msra.mxu0 0.0
    %135 = vmatprep.subr.mxu0 0.0
    %136 = vmatpush1.msra.mxu0 0.0
    %137 = vmatprep.subr.mxu0 0.0
    %138 = vmatpush1.msra.mxu0 0.0
    %139 = vmatprep.subr.mxu0 0.0
    %140 = vmatpush1.msra.mxu0 0.0
    %141 = vmatprep.subr.mxu0 0.0
    %142 = vmatpush1.msra.mxu0 0.0
    %143 = vmatprep.subr.mxu0 0.0
    %144 = vmatpush1.msra.mxu0 0.0
    %145 = vmatprep.subr.mxu0 0.0
    %146 = vmatpush1.msra.mxu0 0.0
    %147 = vmatprep.subr.mxu0 0.0
    %148 = vmatpush1.msra.mxu0 0.0
    %149 = vmatprep.subr.mxu0 0.0
    %150 = vmatpush1.msra.mxu0 0.0
    %151 = vmatprep.subr.mxu0 0.0
    %152 = vmatpush1.msra.mxu0 0.0
    %153 = vmatprep.subr.mxu0 0.0
    %154 = vmatpush1.msra.mxu0 0.0
    %155 = vmatprep.subr.mxu0 0.0
    %156 = vmatpush1.msra.mxu0 0.0
    %157 = vmatprep.subr.mxu0 0.0
    %158 = vmatpush1.msra.mxu0 0.0
    %159 = vmatprep.subr.mxu0 0.0
    %160 = vmatpush1.msra.mxu0 0.0
    %161 = vmatprep.subr.mxu0 0.0
    %162 = vmatpush1.msra.mxu0 0.0
    %163 = vmatprep.subr.mxu0 0.0
    %164 = vmatpush1.msra.mxu0 0.0
    %165 = vmatprep.subr.mxu0 0.0
    %166 = vmatpush1.msra.mxu0 0.0
    %167 = vmatprep.subr.mxu0 0.0
    %168 = vmatpush1.msra.mxu0 0.0
    %169 = vmatprep.subr.mxu0 0.0
    %170 = vmatpush1.msra.mxu0 0.0
    %171 = vmatprep.mubr.f32.mxu0 0.0
    %172 = vmatmul.mubr.f32.gmra.mrb[0].mxu0 %v84
    %v173 = vpop.f32.mrb[0].mxu0
    %v174 = vadd.f32 %v80, %v173
    %v175 = vpop.f32.mrb[0].mxu0
    %176 = vmatprep.mubr.f32.mxu0 0.0
    %177 = vmatmul.mubr.f32.gmra.mrb[0].mxu0 %v87
    %v178 = vpop.f32.mrb[0].mxu0
    %v179 = vadd.f32 %v80, %v178
    %v180 = vpop.f32.mrb[0].mxu0
    %181 = vmatprep.mubr.f32.mxu0 0.0
    %182 = vmatmul.mubr.f32.gmra.mrb[0].mxu0 %v90
    %v183 = vpop.f32.mrb[0].mxu0
    %v184 = vadd.f32 %v80, %v183
    %v185 = vpop.f32.mrb[0].mxu0
    %186 = vmatprep.mubr.f32.mxu0 0.0
    %187 = vmatmul.mubr.f32.gmra.mrb[0].mxu0 %v93
    %v188 = vpop.f32.mrb[0].mxu0
    %v189 = vadd.f32 %v80, %v188
    %v190 = vpop.f32.mrb[0].mxu0
    %191 = vmatprep.mubr.f32.mxu0 0.0
    %192 = vmatmul.mubr.f32.gmra.mrb[0].mxu0 %v96
    %v193 = vpop.f32.mrb[0].mxu0
    %v194 = vadd.f32 %v80, %v193
    %v195 = vpop.f32.mrb[0].mxu0
    %196 = vmatprep.mubr.f32.mxu0 0.0
    %197 = vmatmul.mubr.f32.gmra.mrb[0].mxu0 %v99
    %v198 = vpop.f32.mrb[0].mxu0
    %v199 = vadd.f32 %v80, %v198
    %v200 = vpop.f32.mrb[0].mxu0
    %201 = vmatprep.mubr.f32.mxu0 0.0
    %202 = vmatmul.mubr.f32.gmra.mrb[0].mxu0 %v102
    %v203 = vpop.f32.mrb[0].mxu0
    %v204 = vadd.f32 %v80, %v203
    %v205 = vpop.f32.mrb[0].mxu0
    %206 = vmatprep.mubr.f32.mxu0 0.0
    %207 = vmatmul.mubr.f32.gmra.mrb[0].mxu0 %v105
    %v208 = vpop.f32.mrb[0].mxu0
    %v209 = vadd.f32 %v80, %v208
    %v210 = vpop.f32.mrb[0].mxu0
    %211 = vdwg.mxu0
    %212 = vst [vmem:[#allocation4] sm:$0xff] %v174
    %213 = vst [vmem:[#allocation4 + $0x8] sm:$0xff] %v179
    %214 = vst [vmem:[#allocation4 + $0x10] sm:$0xff] %v184
    %215 = vst [vmem:[#allocation4 + $0x18] sm:$0xff] %v189
    %216 = vst [vmem:[#allocation4 + $0x20] sm:$0xff] %v194
    %217 = vst [vmem:[#allocation4 + $0x28] sm:$0xff] %v199
    %218 = vst [vmem:[#allocation4 + $0x30] sm:$0xff] %v204
    %219 = vst [vmem:[#allocation4 + $0x38] sm:$0xff] %v209
    %v220 = vld [vmem:[%s2] sm:$0xff]
    %v221 = vld [vmem:[%s2 + $0x8] sm:$0xff]
    %v222 = vld [vmem:[%s2 + $0x10] sm:$0xff]
    %v223 = vld [vmem:[%s2 + $0x18] sm:$0xff]
    %v224 = vld [vmem:[#allocation2] sm:$0xff]
    %v225 = vld [vmem:[#allocation3] sm:$0xff]
    %v226 = vld [vmem:[#allocation4] sm:$0xff]
    %vm227 = vcmask 261120
    %v229 = vsel %vm227, %v224, 0
    %231 = vmatprep.subr.mxu0 0.0
    %232 = vmatpush1.msra.mxu0 %v220
    %233 = vmatprep.subr.mxu0 0.0
    %234 = vmatpush1.msra.mxu0 %v221
    %235 = vmatprep.subr.mxu0 0.0
    %236 = vmatpush1.msra.mxu0 %v222
    %237 = vmatprep.subr.mxu0 0.0
    %238 = vmatpush1.msra.mxu0 %v223
    %239 = vmatprep.subr.mxu0 0.0
    %240 = vmatpush1.msra.mxu0 0.0
    %241 = vmatprep.subr.mxu0 0.0
    %242 = vmatpush1.msra.mxu0 0.0
    %243 = vmatprep.subr.mxu0 0.0
    %244 = vmatpush1.msra.mxu0 0.0
    %245 = vmatprep.subr.mxu0 0.0
    %246 = vmatpush1.msra.mxu0 0.0
    %247 = vmatprep.subr.mxu0 0.0
    %248 = vmatpush1.msra.mxu0 0.0
    %249 = vmatprep.subr.mxu0 0.0
    %250 = vmatpush1.msra.mxu0 0.0
    %251 = vmatprep.subr.mxu0 0.0
    %252 = vmatpush1.msra.mxu0 0.0
    %253 = vmatprep.subr.mxu0 0.0
    %254 = vmatpush1.msra.mxu0 0.0
    %255 = vmatprep.subr.mxu0 0.0
    %256 = vmatpush1.msra.mxu0 0.0
    %257 = vmatprep.subr.mxu0 0.0
    %258 = vmatpush1.msra.mxu0 0.0
    %259 = vmatprep.subr.mxu0 0.0
    %260 = vmatpush1.msra.mxu0 0.0
    %261 = vmatprep.subr.mxu0 0.0
    %262 = vmatpush1.msra.mxu0 0.0
    %263 = vmatprep.subr.mxu0 0.0
    %264 = vmatpush1.msra.mxu0 0.0
    %265 = vmatprep.subr.mxu0 0.0
    %266 = vmatpush1.msra.mxu0 0.0
    %267 = vmatprep.subr.mxu0 0.0
    %268 = vmatpush1.msra.mxu0 0.0
    %269 = vmatprep.subr.mxu0 0.0
    %270 = vmatpush1.msra.mxu0 0.0
    %271 = vmatprep.subr.mxu0 0.0
    %272 = vmatpush1.msra.mxu0 0.0
    %273 = vmatprep.subr.mxu0 0.0
    %274 = vmatpush1.msra.mxu0 0.0
    %275 = vmatprep.subr.mxu0 0.0
    %276 = vmatpush1.msra.mxu0 0.0
    %277 = vmatprep.subr.mxu0 0.0
    %278 = vmatpush1.msra.mxu0 0.0
    %279 = vmatprep.subr.mxu0 0.0
    %280 = vmatpush1.msra.mxu0 0.0
    %281 = vmatprep.subr.mxu0 0.0
    %282 = vmatpush1.msra.mxu0 0.0
    %283 = vmatprep.subr.mxu0 0.0
    %284 = vmatpush1.msra.mxu0 0.0
    %285 = vmatprep.subr.mxu0 0.0
    %286 = vmatpush1.msra.mxu0 0.0
    %287 = vmatprep.subr.mxu0 0.0
    %288 = vmatpush1.msra.mxu0 0.0
    %289 = vmatprep.subr.mxu0 0.0
    %290 = vmatpush1.msra.mxu0 0.0
    %291 = vmatprep.subr.mxu0 0.0
    %292 = vmatpush1.msra.mxu0 0.0
    %293 = vmatprep.subr.mxu0 0.0
    %294 = vmatpush1.msra.mxu0 0.0
    %295 = vmatprep.mubr.f32.mxu0 0.0
    %296 = vmatmul.mubr.f32.gmra.mrb[0].mxu0 %v229
    %v297 = vpop.f32.mrb[0].mxu0
    %v298 = vadd.f32 0.0, %v297
    %v299 = vpop.f32.mrb[0].mxu0
    %300 = vdwg.mxu0
    %v301 = vadd.f32 %v226, %v298
    %v302 = vxor.u32 %v301, 2147483648
    %v303 = vmul.f32 %v302, 1.442695
    %v304 = vpow.pop %v303
    %v305 = vadd.f32 %v304, 1.0
    %v306 = vrcp.pop %v305
    %v307 = vmul.f32 1.0, %v306
    %v308 = vtanh.pop %v301
    %310 = vrot.lane.b32.xlu0 %v225, 32
    %v311 = vpop.permute.xlu0 %310
    %v313 = vmul.f32 %v307, %v311
    %315 = vrot.lane.b32.xlu0 %v308, 64
    %v316 = vpop.permute.xlu0 %315
    %v318 = vmul.f32 %v307, %v316
    %320 = vrot.lane.b32.xlu0 %v318, 32
    %v321 = vpop.permute.xlu0 %320
    %v323 = vadd.f32 %v313, %v321
    %v324 = vtanh.pop %v323
    %326 = vrot.lane.b32.xlu0 %v324, 64
    %v327 = vpop.permute.xlu0 %326
    %v329 = vmul.f32 %v307, %v327
    %331 = vrot.lane.b32.xlu0 %v329, 32
    %v332 = vpop.permute.xlu0 %331
    %334 = vst.msk [vmem:[#allocation5] sm:$0xff] %vm227, %v332
    %s335 = scalar_lea.vmem [#allocation4], 8
    %v336 = vld [vmem:[%s335] sm:$0xff]
    %v337 = vsel %vm227, %v332, 0
    %339 = vmatprep.subr.mxu0 0.0
    %340 = vmatpush1.msra.mxu0 %v220
    %341 = vmatprep.subr.mxu0 0.0
    %342 = vmatpush1.msra.mxu0 %v221
    %343 = vmatprep.subr.mxu0 0.0
    %344 = vmatpush1.msra.mxu0 %v222
    %345 = vmatprep.subr.mxu0 0.0
    %346 = vmatpush1.msra.mxu0 %v223
    %347 = vmatprep.subr.mxu0 0.0
    %348 = vmatpush1.msra.mxu0 0.0
    %349 = vmatprep.subr.mxu0 0.0
    %350 = vmatpush1.msra.mxu0 0.0
    %351 = vmatprep.subr.mxu0 0.0
    %352 = vmatpush1.msra.mxu0 0.0
    %353 = vmatprep.subr.mxu0 0.0
    %354 = vmatpush1.msra.mxu0 0.0
    %355 = vmatprep.subr.mxu0 0.0
    %356 = vmatpush1.msra.mxu0 0.0
    %357 = vmatprep.subr.mxu0 0.0
    %358 = vmatpush1.msra.mxu0 0.0
    %359 = vmatprep.subr.mxu0 0.0
    %360 = vmatpush1.msra.mxu0 0.0
    %361 = vmatprep.subr.mxu0 0.0
    %362 = vmatpush1.msra.mxu0 0.0
    %363 = vmatprep.subr.mxu0 0.0
    %364 = vmatpush1.msra.mxu0 0.0
    %365 = vmatprep.subr.mxu0 0.0
    %366 = vmatpush1.msra.mxu0 0.0
    %367 = vmatprep.subr.mxu0 0.0
    %368 = vmatpush1.msra.mxu0 0.0
    %369 = vmatprep.subr.mxu0 0.0
    %370 = vmatpush1.msra.mxu0 0.0
    %371 = vmatprep.subr.mxu0 0.0
    %372 = vmatpush1.msra.mxu0 0.0
    %373 = vmatprep.subr.mxu0 0.0
    %374 = vmatpush1.msra.mxu0 0.0
    %375 = vmatprep.subr.mxu0 0.0
    %376 = vmatpush1.msra.mxu0 0.0
    %377 = vmatprep.subr.mxu0 0.0
    %378 = vmatpush1.msra.mxu0 0.0
    %379 = vmatprep.subr.mxu0 0.0
    %380 = vmatpush1.msra.mxu0 0.0
    %381 = vmatprep.subr.mxu0 0.0
    %382 = vmatpush1.msra.mxu0 0.0
    %383 = vmatprep.subr.mxu0 0.0
    %384 = vmatpush1.msra.mxu0 0.0
    %385 = vmatprep.subr.mxu0 0.0
    %386 = vmatpush1.msra.mxu0 0.0
    %387 = vmatprep.subr.mxu0 0.0
    %388 = vmatpush1.msra.mxu0 0.0
    %389 = vmatprep.subr.mxu0 0.0
    %390 = vmatpush1.msra.mxu0 0.0
    %391 = vmatprep.subr.mxu0 0.0
    %392 = vmatpush1.msra.mxu0 0.0
    %393 = vmatprep.subr.mxu0 0.0
    %394 = vmatpush1.msra.mxu0 0.0
    %395 = vmatprep.subr.mxu0 0.0
    %396 = vmatpush1.msra.mxu0 0.0
    %397 = vmatprep.subr.mxu0 0.0
    %398 = vmatpush1.msra.mxu0 0.0
    %399 = vmatprep.subr.mxu0 0.0
    %400 = vmatpush1.msra.mxu0 0.0
    %401 = vmatprep.subr.mxu0 0.0
    %402 = vmatpush1.msra.mxu0 0.0
    %403 = vmatprep.mubr.f32.mxu0 0.0
    %404 = vmatmul.mubr.f32.gmra.mrb[0].mxu0 %v337
    %v405 = vpop.f32.mrb[0].mxu0
    %v406 = vadd.f32 0.0, %v405
    %v407 = vpop.f32.mrb[0].mxu0
    %408 = vdwg.mxu0
    %v409 = vadd.f32 %v336, %v406
    %v410 = vxor.u32 %v409, 2147483648
    %v411 = vmul.f32 %v410, 1.442695
    %v412 = vpow.pop %v411
    %v413 = vadd.f32 %v412, 1.0
    %v414 = vrcp.pop %v413
    %v415 = vmul.f32 1.0, %v414
    %v416 = vtanh.pop %v409
    %v417 = vmul.f32 %v415, %v323
    %419 = vrot.lane.b32.xlu0 %v416, 64
    %v420 = vpop.permute.xlu0 %419
    %v422 = vmul.f32 %v415, %v420
    %424 = vrot.lane.b32.xlu0 %v422, 32
    %v425 = vpop.permute.xlu0 %424
    %v427 = vadd.f32 %v417, %v425
    %v428 = vtanh.pop %v427
    %430 = vrot.lane.b32.xlu0 %v428, 64
    %v431 = vpop.permute.xlu0 %430
    %v433 = vmul.f32 %v415, %v431
    %435 = vrot.lane.b32.xlu0 %v433, 32
    %v436 = vpop.permute.xlu0 %435
    %s438 = scalar_lea.vmem [#allocation5], 8
    %439 = vst.msk [vmem:[%s438] sm:$0xff] %vm227, %v436
    %s440 = scalar_lea.vmem [#allocation4], 16
    %v441 = vld [vmem:[%s440] sm:$0xff]
    %v442 = vsel %vm227, %v436, 0
    %444 = vmatprep.subr.mxu0 0.0
    %445 = vmatpush1.msra.mxu0 %v220
    %446 = vmatprep.subr.mxu0 0.0
    %447 = vmatpush1.msra.mxu0 %v221
    %448 = vmatprep.subr.mxu0 0.0
    %449 = vmatpush1.msra.mxu0 %v222
    %450 = vmatprep.subr.mxu0 0.0
    %451 = vmatpush1.msra.mxu0 %v223
    %452 = vmatprep.subr.mxu0 0.0
    %453 = vmatpush1.msra.mxu0 0.0
    %454 = vmatprep.subr.mxu0 0.0
    %455 = vmatpush1.msra.mxu0 0.0
    %456 = vmatprep.subr.mxu0 0.0
    %457 = vmatpush1.msra.mxu0 0.0
    %458 = vmatprep.subr.mxu0 0.0
    %459 = vmatpush1.msra.mxu0 0.0
    %460 = vmatprep.subr.mxu0 0.0
    %461 = vmatpush1.msra.mxu0 0.0
    %462 = vmatprep.subr.mxu0 0.0
    %463 = vmatpush1.msra.mxu0 0.0
    %464 = vmatprep.subr.mxu0 0.0
    %465 = vmatpush1.msra.mxu0 0.0
    %466 = vmatprep.subr.mxu0 0.0
    %467 = vmatpush1.msra.mxu0 0.0
    %468 = vmatprep.subr.mxu0 0.0
    %469 = vmatpush1.msra.mxu0 0.0
    %470 = vmatprep.subr.mxu0 0.0
    %471 = vmatpush1.msra.mxu0 0.0
    %472 = vmatprep.subr.mxu0 0.0
    %473 = vmatpush1.msra.mxu0 0.0
    %474 = vmatprep.subr.mxu0 0.0
    %475 = vmatpush1.msra.mxu0 0.0
    %476 = vmatprep.subr.mxu0 0.0
    %477 = vmatpush1.msra.mxu0 0.0
    %478 = vmatprep.subr.mxu0 0.0
    %479 = vmatpush1.msra.mxu0 0.0
    %480 = vmatprep.subr.mxu0 0.0
    %481 = vmatpush1.msra.mxu0 0.0
    %482 = vmatprep.subr.mxu0 0.0
    %483 = vmatpush1.msra.mxu0 0.0
    %484 = vmatprep.subr.mxu0 0.0
    %485 = vmatpush1.msra.mxu0 0.0
    %486 = vmatprep.subr.mxu0 0.0
    %487 = vmatpush1.msra.mxu0 0.0
    %488 = vmatprep.subr.mxu0 0.0
    %489 = vmatpush1.msra.mxu0 0.0
    %490 = vmatprep.subr.mxu0 0.0
    %491 = vmatpush1.msra.mxu0 0.0
    %492 = vmatprep.subr.mxu0 0.0
    %493 = vmatpush1.msra.mxu0 0.0
    %494 = vmatprep.subr.mxu0 0.0
    %495 = vmatpush1.msra.mxu0 0.0
    %496 = vmatprep.subr.mxu0 0.0
    %497 = vmatpush1.msra.mxu0 0.0
    %498 = vmatprep.subr.mxu0 0.0
    %499 = vmatpush1.msra.mxu0 0.0
    %500 = vmatprep.subr.mxu0 0.0
    %501 = vmatpush1.msra.mxu0 0.0
    %502 = vmatprep.subr.mxu0 0.0
    %503 = vmatpush1.msra.mxu0 0.0
    %504 = vmatprep.subr.mxu0 0.0
    %505 = vmatpush1.msra.mxu0 0.0
    %506 = vmatprep.subr.mxu0 0.0
    %507 = vmatpush1.msra.mxu0 0.0
    %508 = vmatprep.mubr.f32.mxu0 0.0
    %509 = vmatmul.mubr.f32.gmra.mrb[0].mxu0 %v442
    %v510 = vpop.f32.mrb[0].mxu0
    %v511 = vadd.f32 0.0, %v510
    %v512 = vpop.f32.mrb[0].mxu0
    %513 = vdwg.mxu0
    %v514 = vadd.f32 %v441, %v511
    %v515 = vxor.u32 %v514, 2147483648
    %v516 = vmul.f32 %v515, 1.442695
    %v517 = vpow.pop %v516
    %v518 = vadd.f32 %v517, 1.0
    %v519 = vrcp.pop %v518
    %v520 = vmul.f32 1.0, %v519
    %v521 = vtanh.pop %v514
    %v522 = vmul.f32 %v520, %v427
    %524 = vrot.lane.b32.xlu0 %v521, 64
    %v525 = vpop.permute.xlu0 %524
    %v527 = vmul.f32 %v520, %v525
    %529 = vrot.lane.b32.xlu0 %v527, 32
    %v530 = vpop.permute.xlu0 %529
    %v532 = vadd.f32 %v522, %v530
    %v533 = vtanh.pop %v532
    %535 = vrot.lane.b32.xlu0 %v533, 64
    %v536 = vpop.permute.xlu0 %535
    %v538 = vmul.f32 %v520, %v536
    %540 = vrot.lane.b32.xlu0 %v538, 32
    %v541 = vpop.permute.xlu0 %540
    %s543 = scalar_lea.vmem [#allocation5], 16
    %544 = vst.msk [vmem:[%s543] sm:$0xff] %vm227, %v541
    %s545 = scalar_lea.vmem [#allocation4], 24
    %v546 = vld [vmem:[%s545] sm:$0xff]
    %v547 = vsel %vm227, %v541, 0
    %549 = vmatprep.subr.mxu0 0.0
    %550 = vmatpush1.msra.mxu0 %v220
    %551 = vmatprep.subr.mxu0 0.0
    %552 = vmatpush1.msra.mxu0 %v221
    %553 = vmatprep.subr.mxu0 0.0
    %554 = vmatpush1.msra.mxu0 %v222
    %555 = vmatprep.subr.mxu0 0.0
    %556 = vmatpush1.msra.mxu0 %v223
    %557 = vmatprep.subr.mxu0 0.0
    %558 = vmatpush1.msra.mxu0 0.0
    %559 = vmatprep.subr.mxu0 0.0
    %560 = vmatpush1.msra.mxu0 0.0
    %561 = vmatprep.subr.mxu0 0.0
    %562 = vmatpush1.msra.mxu0 0.0
    %563 = vmatprep.subr.mxu0 0.0
    %564 = vmatpush1.msra.mxu0 0.0
    %565 = vmatprep.subr.mxu0 0.0
    %566 = vmatpush1.msra.mxu0 0.0
    %567 = vmatprep.subr.mxu0 0.0
    %568 = vmatpush1.msra.mxu0 0.0
    %569 = vmatprep.subr.mxu0 0.0
    %570 = vmatpush1.msra.mxu0 0.0
    %571 = vmatprep.subr.mxu0 0.0
    %572 = vmatpush1.msra.mxu0 0.0
    %573 = vmatprep.subr.mxu0 0.0
    %574 = vmatpush1.msra.mxu0 0.0
    %575 = vmatprep.subr.mxu0 0.0
    %576 = vmatpush1.msra.mxu0 0.0
    %577 = vmatprep.subr.mxu0 0.0
    %578 = vmatpush1.msra.mxu0 0.0
    %579 = vmatprep.subr.mxu0 0.0
    %580 = vmatpush1.msra.mxu0 0.0
    %581 = vmatprep.subr.mxu0 0.0
    %582 = vmatpush1.msra.mxu0 0.0
    %583 = vmatprep.subr.mxu0 0.0
    %584 = vmatpush1.msra.mxu0 0.0
    %585 = vmatprep.subr.mxu0 0.0
    %586 = vmatpush1.msra.mxu0 0.0
    %587 = vmatprep.subr.mxu0 0.0
    %588 = vmatpush1.msra.mxu0 0.0
    %589 = vmatprep.subr.mxu0 0.0
    %590 = vmatpush1.msra.mxu0 0.0
    %591 = vmatprep.subr.mxu0 0.0
    %592 = vmatpush1.msra.mxu0 0.0
    %593 = vmatprep.subr.mxu0 0.0
    %594 = vmatpush1.msra.mxu0 0.0
    %595 = vmatprep.subr.mxu0 0.0
    %596 = vmatpush1.msra.mxu0 0.0
    %597 = vmatprep.subr.mxu0 0.0
    %598 = vmatpush1.msra.mxu0 0.0
    %599 = vmatprep.subr.mxu0 0.0
    %600 = vmatpush1.msra.mxu0 0.0
    %601 = vmatprep.subr.mxu0 0.0
    %602 = vmatpush1.msra.mxu0 0.0
    %603 = vmatprep.subr.mxu0 0.0
    %604 = vmatpush1.msra.mxu0 0.0
    %605 = vmatprep.subr.mxu0 0.0
    %606 = vmatpush1.msra.mxu0 0.0
    %607 = vmatprep.subr.mxu0 0.0
    %608 = vmatpush1.msra.mxu0 0.0
    %609 = vmatprep.subr.mxu0 0.0
    %610 = vmatpush1.msra.mxu0 0.0
    %611 = vmatprep.subr.mxu0 0.0
    %612 = vmatpush1.msra.mxu0 0.0
    %613 = vmatprep.mubr.f32.mxu0 0.0
    %614 = vmatmul.mubr.f32.gmra.mrb[0].mxu0 %v547
    %v615 = vpop.f32.mrb[0].mxu0
    %v616 = vadd.f32 0.0, %v615
    %v617 = vpop.f32.mrb[0].mxu0
    %618 = vdwg.mxu0
    %v619 = vadd.f32 %v546, %v616
    %v620 = vxor.u32 %v619, 2147483648
    %v621 = vmul.f32 %v620, 1.442695
    %v622 = vpow.pop %v621
    %v623 = vadd.f32 %v622, 1.0
    %v624 = vrcp.pop %v623
    %v625 = vmul.f32 1.0, %v624
    %v626 = vtanh.pop %v619
    %v627 = vmul.f32 %v625, %v532
    %629 = vrot.lane.b32.xlu0 %v626, 64
    %v630 = vpop.permute.xlu0 %629
    %v632 = vmul.f32 %v625, %v630
    %634 = vrot.lane.b32.xlu0 %v632, 32
    %v635 = vpop.permute.xlu0 %634
    %v637 = vadd.f32 %v627, %v635
    %v638 = vtanh.pop %v637
    %640 = vrot.lane.b32.xlu0 %v638, 64
    %v641 = vpop.permute.xlu0 %640
    %v643 = vmul.f32 %v625, %v641
    %645 = vrot.lane.b32.xlu0 %v643, 32
    %v646 = vpop.permute.xlu0 %645
    %s648 = scalar_lea.vmem [#allocation5], 24
    %649 = vst.msk [vmem:[%s648] sm:$0xff] %vm227, %v646
    %s650 = scalar_lea.vmem [#allocation4], 32
    %v651 = vld [vmem:[%s650] sm:$0xff]
    %v652 = vsel %vm227, %v646, 0
    %654 = vmatprep.subr.mxu0 0.0
    %655 = vmatpush1.msra.mxu0 %v220
    %656 = vmatprep.subr.mxu0 0.0
    %657 = vmatpush1.msra.mxu0 %v221
    %658 = vmatprep.subr.mxu0 0.0
    %659 = vmatpush1.msra.mxu0 %v222
    %660 = vmatprep.subr.mxu0 0.0
    %661 = vmatpush1.msra.mxu0 %v223
    %662 = vmatprep.subr.mxu0 0.0
    %663 = vmatpush1.msra.mxu0 0.0
    %664 = vmatprep.subr.mxu0 0.0
    %665 = vmatpush1.msra.mxu0 0.0
    %666 = vmatprep.subr.mxu0 0.0
    %667 = vmatpush1.msra.mxu0 0.0
    %668 = vmatprep.subr.mxu0 0.0
    %669 = vmatpush1.msra.mxu0 0.0
    %670 = vmatprep.subr.mxu0 0.0
    %671 = vmatpush1.msra.mxu0 0.0
    %672 = vmatprep.subr.mxu0 0.0
    %673 = vmatpush1.msra.mxu0 0.0
    %674 = vmatprep.subr.mxu0 0.0
    %675 = vmatpush1.msra.mxu0 0.0
    %676 = vmatprep.subr.mxu0 0.0
    %677 = vmatpush1.msra.mxu0 0.0
    %678 = vmatprep.subr.mxu0 0.0
    %679 = vmatpush1.msra.mxu0 0.0
    %680 = vmatprep.subr.mxu0 0.0
    %681 = vmatpush1.msra.mxu0 0.0
    %682 = vmatprep.subr.mxu0 0.0
    %683 = vmatpush1.msra.mxu0 0.0
    %684 = vmatprep.subr.mxu0 0.0
    %685 = vmatpush1.msra.mxu0 0.0
    %686 = vmatprep.subr.mxu0 0.0
    %687 = vmatpush1.msra.mxu0 0.0
    %688 = vmatprep.subr.mxu0 0.0
    %689 = vmatpush1.msra.mxu0 0.0
    %690 = vmatprep.subr.mxu0 0.0
    %691 = vmatpush1.msra.mxu0 0.0
    %692 = vmatprep.subr.mxu0 0.0
    %693 = vmatpush1.msra.mxu0 0.0
    %694 = vmatprep.subr.mxu0 0.0
    %695 = vmatpush1.msra.mxu0 0.0
    %696 = vmatprep.subr.mxu0 0.0
    %697 = vmatpush1.msra.mxu0 0.0
    %698 = vmatprep.subr.mxu0 0.0
    %699 = vmatpush1.msra.mxu0 0.0
    %700 = vmatprep.subr.mxu0 0.0
    %701 = vmatpush1.msra.mxu0 0.0
    %702 = vmatprep.subr.mxu0 0.0
    %703 = vmatpush1.msra.mxu0 0.0
    %704 = vmatprep.subr.mxu0 0.0
    %705 = vmatpush1.msra.mxu0 0.0
    %706 = vmatprep.subr.mxu0 0.0
    %707 = vmatpush1.msra.mxu0 0.0
    %708 = vmatprep.subr.mxu0 0.0
    %709 = vmatpush1.msra.mxu0 0.0
    %710 = vmatprep.subr.mxu0 0.0
    %711 = vmatpush1.msra.mxu0 0.0
    %712 = vmatprep.subr.mxu0 0.0
    %713 = vmatpush1.msra.mxu0 0.0
    %714 = vmatprep.subr.mxu0 0.0
    %715 = vmatpush1.msra.mxu0 0.0
    %716 = vmatprep.subr.mxu0 0.0
    %717 = vmatpush1.msra.mxu0 0.0
    %718 = vmatprep.mubr.f32.mxu0 0.0
    %719 = vmatmul.mubr.f32.gmra.mrb[0].mxu0 %v652
    %v720 = vpop.f32.mrb[0].mxu0
    %v721 = vadd.f32 0.0, %v720
    %v722 = vpop.f32.mrb[0].mxu0
    %723 = vdwg.mxu0
    %v724 = vadd.f32 %v651, %v721
    %v725 = vxor.u32 %v724, 2147483648
    %v726 = vmul.f32 %v725, 1.442695
    %v727 = vpow.pop %v726
    %v728 = vadd.f32 %v727, 1.0
    %v729 = vrcp.pop %v728
    %v730 = vmul.f32 1.0, %v729
    %v731 = vtanh.pop %v724
    %v732 = vmul.f32 %v730, %v637
    %734 = vrot.lane.b32.xlu0 %v731, 64
    %v735 = vpop.permute.xlu0 %734
    %v737 = vmul.f32 %v730, %v735
    %739 = vrot.lane.b32.xlu0 %v737, 32
    %v740 = vpop.permute.xlu0 %739
    %v742 = vadd.f32 %v732, %v740
    %v743 = vtanh.pop %v742
    %745 = vrot.lane.b32.xlu0 %v743, 64
    %v746 = vpop.permute.xlu0 %745
    %v748 = vmul.f32 %v730, %v746
    %750 = vrot.lane.b32.xlu0 %v748, 32
    %v751 = vpop.permute.xlu0 %750
    %s753 = scalar_lea.vmem [#allocation5], 32
    %754 = vst.msk [vmem:[%s753] sm:$0xff] %vm227, %v751
    %s755 = scalar_lea.vmem [#allocation4], 40
    %v756 = vld [vmem:[%s755] sm:$0xff]
    %v757 = vsel %vm227, %v751, 0
    %759 = vmatprep.subr.mxu0 0.0
    %760 = vmatpush1.msra.mxu0 %v220
    %761 = vmatprep.subr.mxu0 0.0
    %762 = vmatpush1.msra.mxu0 %v221
    %763 = vmatprep.subr.mxu0 0.0
    %764 = vmatpush1.msra.mxu0 %v222
    %765 = vmatprep.subr.mxu0 0.0
    %766 = vmatpush1.msra.mxu0 %v223
    %767 = vmatprep.subr.mxu0 0.0
    %768 = vmatpush1.msra.mxu0 0.0
    %769 = vmatprep.subr.mxu0 0.0
    %770 = vmatpush1.msra.mxu0 0.0
    %771 = vmatprep.subr.mxu0 0.0
    %772 = vmatpush1.msra.mxu0 0.0
    %773 = vmatprep.subr.mxu0 0.0
    %774 = vmatpush1.msra.mxu0 0.0
    %775 = vmatprep.subr.mxu0 0.0
    %776 = vmatpush1.msra.mxu0 0.0
    %777 = vmatprep.subr.mxu0 0.0
    %778 = vmatpush1.msra.mxu0 0.0
    %779 = vmatprep.subr.mxu0 0.0
    %780 = vmatpush1.msra.mxu0 0.0
    %781 = vmatprep.subr.mxu0 0.0
    %782 = vmatpush1.msra.mxu0 0.0
    %783 = vmatprep.subr.mxu0 0.0
    %784 = vmatpush1.msra.mxu0 0.0
    %785 = vmatprep.subr.mxu0 0.0
    %786 = vmatpush1.msra.mxu0 0.0
    %787 = vmatprep.subr.mxu0 0.0
    %788 = vmatpush1.msra.mxu0 0.0
    %789 = vmatprep.subr.mxu0 0.0
    %790 = vmatpush1.msra.mxu0 0.0
    %791 = vmatprep.subr.mxu0 0.0
    %792 = vmatpush1.msra.mxu0 0.0
    %793 = vmatprep.subr.mxu0 0.0
    %794 = vmatpush1.msra.mxu0 0.0
    %795 = vmatprep.subr.mxu0 0.0
    %796 = vmatpush1.msra.mxu0 0.0
    %797 = vmatprep.subr.mxu0 0.0
    %798 = vmatpush1.msra.mxu0 0.0
    %799 = vmatprep.subr.mxu0 0.0
    %800 = vmatpush1.msra.mxu0 0.0
    %801 = vmatprep.subr.mxu0 0.0
    %802 = vmatpush1.msra.mxu0 0.0
    %803 = vmatprep.subr.mxu0 0.0
    %804 = vmatpush1.msra.mxu0 0.0
    %805 = vmatprep.subr.mxu0 0.0
    %806 = vmatpush1.msra.mxu0 0.0
    %807 = vmatprep.subr.mxu0 0.0
    %808 = vmatpush1.msra.mxu0 0.0
    %809 = vmatprep.subr.mxu0 0.0
    %810 = vmatpush1.msra.mxu0 0.0
    %811 = vmatprep.subr.mxu0 0.0
    %812 = vmatpush1.msra.mxu0 0.0
    %813 = vmatprep.subr.mxu0 0.0
    %814 = vmatpush1.msra.mxu0 0.0
    %815 = vmatprep.subr.mxu0 0.0
    %816 = vmatpush1.msra.mxu0 0.0
    %817 = vmatprep.subr.mxu0 0.0
    %818 = vmatpush1.msra.mxu0 0.0
    %819 = vmatprep.subr.mxu0 0.0
    %820 = vmatpush1.msra.mxu0 0.0
    %821 = vmatprep.subr.mxu0 0.0
    %822 = vmatpush1.msra.mxu0 0.0
    %823 = vmatprep.mubr.f32.mxu0 0.0
    %824 = vmatmul.mubr.f32.gmra.mrb[0].mxu0 %v757
    %v825 = vpop.f32.mrb[0].mxu0
    %v826 = vadd.f32 0.0, %v825
    %v827 = vpop.f32.mrb[0].mxu0
    %828 = vdwg.mxu0
    %v829 = vadd.f32 %v756, %v826
    %v830 = vxor.u32 %v829, 2147483648
    %v831 = vmul.f32 %v830, 1.442695
    %v832 = vpow.pop %v831
    %v833 = vadd.f32 %v832, 1.0
    %v834 = vrcp.pop %v833
    %v835 = vmul.f32 1.0, %v834
    %v836 = vtanh.pop %v829
    %v837 = vmul.f32 %v835, %v742
    %839 = vrot.lane.b32.xlu0 %v836, 64
    %v840 = vpop.permute.xlu0 %839
    %v842 = vmul.f32 %v835, %v840
    %844 = vrot.lane.b32.xlu0 %v842, 32
    %v845 = vpop.permute.xlu0 %844
    %v847 = vadd.f32 %v837, %v845
    %v848 = vtanh.pop %v847
    %850 = vrot.lane.b32.xlu0 %v848, 64
    %v851 = vpop.permute.xlu0 %850
    %v853 = vmul.f32 %v835, %v851
    %855 = vrot.lane.b32.xlu0 %v853, 32
    %v856 = vpop.permute.xlu0 %855
    %s858 = scalar_lea.vmem [#allocation5], 40
    %859 = vst.msk [vmem:[%s858] sm:$0xff] %vm227, %v856
    %s860 = scalar_lea.vmem [#allocation4], 48
    %v861 = vld [vmem:[%s860] sm:$0xff]
    %v862 = vsel %vm227, %v856, 0
    %864 = vmatprep.subr.mxu0 0.0
    %865 = vmatpush1.msra.mxu0 %v220
    %866 = vmatprep.subr.mxu0 0.0
    %867 = vmatpush1.msra.mxu0 %v221
    %868 = vmatprep.subr.mxu0 0.0
    %869 = vmatpush1.msra.mxu0 %v222
    %870 = vmatprep.subr.mxu0 0.0
    %871 = vmatpush1.msra.mxu0 %v223
    %872 = vmatprep.subr.mxu0 0.0
    %873 = vmatpush1.msra.mxu0 0.0
    %874 = vmatprep.subr.mxu0 0.0
    %875 = vmatpush1.msra.mxu0 0.0
    %876 = vmatprep.subr.mxu0 0.0
    %877 = vmatpush1.msra.mxu0 0.0
    %878 = vmatprep.subr.mxu0 0.0
    %879 = vmatpush1.msra.mxu0 0.0
    %880 = vmatprep.subr.mxu0 0.0
    %881 = vmatpush1.msra.mxu0 0.0
    %882 = vmatprep.subr.mxu0 0.0
    %883 = vmatpush1.msra.mxu0 0.0
    %884 = vmatprep.subr.mxu0 0.0
    %885 = vmatpush1.msra.mxu0 0.0
    %886 = vmatprep.subr.mxu0 0.0
    %887 = vmatpush1.msra.mxu0 0.0
    %888 = vmatprep.subr.mxu0 0.0
    %889 = vmatpush1.msra.mxu0 0.0
    %890 = vmatprep.subr.mxu0 0.0
    %891 = vmatpush1.msra.mxu0 0.0
    %892 = vmatprep.subr.mxu0 0.0
    %893 = vmatpush1.msra.mxu0 0.0
    %894 = vmatprep.subr.mxu0 0.0
    %895 = vmatpush1.msra.mxu0 0.0
    %896 = vmatprep.subr.mxu0 0.0
    %897 = vmatpush1.msra.mxu0 0.0
    %898 = vmatprep.subr.mxu0 0.0
    %899 = vmatpush1.msra.mxu0 0.0
    %900 = vmatprep.subr.mxu0 0.0
    %901 = vmatpush1.msra.mxu0 0.0
    %902 = vmatprep.subr.mxu0 0.0
    %903 = vmatpush1.msra.mxu0 0.0
    %904 = vmatprep.subr.mxu0 0.0
    %905 = vmatpush1.msra.mxu0 0.0
    %906 = vmatprep.subr.mxu0 0.0
    %907 = vmatpush1.msra.mxu0 0.0
    %908 = vmatprep.subr.mxu0 0.0
    %909 = vmatpush1.msra.mxu0 0.0
    %910 = vmatprep.subr.mxu0 0.0
    %911 = vmatpush1.msra.mxu0 0.0
    %912 = vmatprep.subr.mxu0 0.0
    %913 = vmatpush1.msra.mxu0 0.0
    %914 = vmatprep.subr.mxu0 0.0
    %915 = vmatpush1.msra.mxu0 0.0
    %916 = vmatprep.subr.mxu0 0.0
    %917 = vmatpush1.msra.mxu0 0.0
    %918 = vmatprep.subr.mxu0 0.0
    %919 = vmatpush1.msra.mxu0 0.0
    %920 = vmatprep.subr.mxu0 0.0
    %921 = vmatpush1.msra.mxu0 0.0
    %922 = vmatprep.subr.mxu0 0.0
    %923 = vmatpush1.msra.mxu0 0.0
    %924 = vmatprep.subr.mxu0 0.0
    %925 = vmatpush1.msra.mxu0 0.0
    %926 = vmatprep.subr.mxu0 0.0
    %927 = vmatpush1.msra.mxu0 0.0
    %928 = vmatprep.mubr.f32.mxu0 0.0
    %929 = vmatmul.mubr.f32.gmra.mrb[0].mxu0 %v862
    %v930 = vpop.f32.mrb[0].mxu0
    %v931 = vadd.f32 0.0, %v930
    %v932 = vpop.f32.mrb[0].mxu0
    %933 = vdwg.mxu0
    %v934 = vadd.f32 %v861, %v931
    %v935 = vxor.u32 %v934, 2147483648
    %v936 = vmul.f32 %v935, 1.442695
    %v937 = vpow.pop %v936
    %v938 = vadd.f32 %v937, 1.0
    %v939 = vrcp.pop %v938
    %v940 = vmul.f32 1.0, %v939
    %v941 = vtanh.pop %v934
    %v942 = vmul.f32 %v940, %v847
    %944 = vrot.lane.b32.xlu0 %v941, 64
    %v945 = vpop.permute.xlu0 %944
    %v947 = vmul.f32 %v940, %v945
    %949 = vrot.lane.b32.xlu0 %v947, 32
    %v950 = vpop.permute.xlu0 %949
    %v952 = vadd.f32 %v942, %v950
    %v953 = vtanh.pop %v952
    %955 = vrot.lane.b32.xlu0 %v953, 64
    %v956 = vpop.permute.xlu0 %955
    %v958 = vmul.f32 %v940, %v956
    %960 = vrot.lane.b32.xlu0 %v958, 32
    %v961 = vpop.permute.xlu0 %960
    %s963 = scalar_lea.vmem [#allocation5], 48
    %964 = vst.msk [vmem:[%s963] sm:$0xff] %vm227, %v961
    %s965 = scalar_lea.vmem [#allocation4], 56
    %v966 = vld [vmem:[%s965] sm:$0xff]
    %v967 = vsel %vm227, %v961, 0
    %969 = vmatprep.subr.mxu0 0.0
    %970 = vmatpush1.msra.mxu0 %v220
    %971 = vmatprep.subr.mxu0 0.0
    %972 = vmatpush1.msra.mxu0 %v221
    %973 = vmatprep.subr.mxu0 0.0
    %974 = vmatpush1.msra.mxu0 %v222
    %975 = vmatprep.subr.mxu0 0.0
    %976 = vmatpush1.msra.mxu0 %v223
    %977 = vmatprep.subr.mxu0 0.0
    %978 = vmatpush1.msra.mxu0 0.0
    %979 = vmatprep.subr.mxu0 0.0
    %980 = vmatpush1.msra.mxu0 0.0
    %981 = vmatprep.subr.mxu0 0.0
    %982 = vmatpush1.msra.mxu0 0.0
    %983 = vmatprep.subr.mxu0 0.0
    %984 = vmatpush1.msra.mxu0 0.0
    %985 = vmatprep.subr.mxu0 0.0
    %986 = vmatpush1.msra.mxu0 0.0
    %987 = vmatprep.subr.mxu0 0.0
    %988 = vmatpush1.msra.mxu0 0.0
    %989 = vmatprep.subr.mxu0 0.0
    %990 = vmatpush1.msra.mxu0 0.0
    %991 = vmatprep.subr.mxu0 0.0
    %992 = vmatpush1.msra.mxu0 0.0
    %993 = vmatprep.subr.mxu0 0.0
    %994 = vmatpush1.msra.mxu0 0.0
    %995 = vmatprep.subr.mxu0 0.0
    %996 = vmatpush1.msra.mxu0 0.0
    %997 = vmatprep.subr.mxu0 0.0
    %998 = vmatpush1.msra.mxu0 0.0
    %999 = vmatprep.subr.mxu0 0.0
    %1000 = vmatpush1.msra.mxu0 0.0
    %1001 = vmatprep.subr.mxu0 0.0
    %1002 = vmatpush1.msra.mxu0 0.0
    %1003 = vmatprep.subr.mxu0 0.0
    %1004 = vmatpush1.msra.mxu0 0.0
    %1005 = vmatprep.subr.mxu0 0.0
    %1006 = vmatpush1.msra.mxu0 0.0
    %1007 = vmatprep.subr.mxu0 0.0
    %1008 = vmatpush1.msra.mxu0 0.0
    %1009 = vmatprep.subr.mxu0 0.0
    %1010 = vmatpush1.msra.mxu0 0.0
    %1011 = vmatprep.subr.mxu0 0.0
    %1012 = vmatpush1.msra.mxu0 0.0
    %1013 = vmatprep.subr.mxu0 0.0
    %1014 = vmatpush1.msra.mxu0 0.0
    %1015 = vmatprep.subr.mxu0 0.0
    %1016 = vmatpush1.msra.mxu0 0.0
    %1017 = vmatprep.subr.mxu0 0.0
    %1018 = vmatpush1.msra.mxu0 0.0
    %1019 = vmatprep.subr.mxu0 0.0
    %1020 = vmatpush1.msra.mxu0 0.0
    %1021 = vmatprep.subr.mxu0 0.0
    %1022 = vmatpush1.msra.mxu0 0.0
    %1023 = vmatprep.subr.mxu0 0.0
    %1024 = vmatpush1.msra.mxu0 0.0
    %1025 = vmatprep.subr.mxu0 0.0
    %1026 = vmatpush1.msra.mxu0 0.0
    %1027 = vmatprep.subr.mxu0 0.0
    %1028 = vmatpush1.msra.mxu0 0.0
    %1029 = vmatprep.subr.mxu0 0.0
    %1030 = vmatpush1.msra.mxu0 0.0
    %1031 = vmatprep.subr.mxu0 0.0
    %1032 = vmatpush1.msra.mxu0 0.0
    %1033 = vmatprep.mubr.f32.mxu0 0.0
    %1034 = vmatmul.mubr.f32.gmra.mrb[0].mxu0 %v967
    %v1035 = vpop.f32.mrb[0].mxu0
    %v1036 = vadd.f32 0.0, %v1035
    %v1037 = vpop.f32.mrb[0].mxu0
    %1038 = vdwg.mxu0
    %v1039 = vadd.f32 %v966, %v1036
    %v1040 = vxor.u32 %v1039, 2147483648
    %v1041 = vmul.f32 %v1040, 1.442695
    %v1042 = vpow.pop %v1041
    %v1043 = vadd.f32 %v1042, 1.0
    %v1044 = vrcp.pop %v1043
    %v1045 = vmul.f32 1.0, %v1044
    %v1046 = vtanh.pop %v1039
    %v1047 = vmul.f32 %v1045, %v952
    %1049 = vrot.lane.b32.xlu0 %v1046, 64
    %v1050 = vpop.permute.xlu0 %1049
    %v1052 = vmul.f32 %v1045, %v1050
    %1054 = vrot.lane.b32.xlu0 %v1052, 32
    %v1055 = vpop.permute.xlu0 %1054
    %v1057 = vadd.f32 %v1047, %v1055
    %v1058 = vtanh.pop %v1057
    %1060 = vrot.lane.b32.xlu0 %v1058, 64
    %v1061 = vpop.permute.xlu0 %1060
    %v1063 = vmul.f32 %v1045, %v1061
    %1065 = vrot.lane.b32.xlu0 %v1063, 32
    %v1066 = vpop.permute.xlu0 %1065
    %s1068 = scalar_lea.vmem [#allocation5], 56
    %1069 = vst.msk [vmem:[%s1068] sm:$0xff] %vm227, %v1066
    %1070 = vst.msk [vmem:[#allocation2] sm:$0xff] %vm227, %v1066
    %1072 = vrot.lane.b32.xlu0 %v1057, 96
    %v1073 = vpop.permute.xlu0 %1072
    %1075 = vst.msk [vmem:[#allocation3] sm:$0xff] %vm227, %v1073
    %v1076 = vld [vmem:[#allocation5] sm:$0xff]
    %v1077 = vld [vmem:[#allocation5 + $0x8] sm:$0xff]
    %v1078 = vld [vmem:[#allocation5 + $0x10] sm:$0xff]
    %v1079 = vld [vmem:[#allocation5 + $0x18] sm:$0xff]
    %v1080 = vld [vmem:[#allocation5 + $0x20] sm:$0xff]
    %v1081 = vld [vmem:[#allocation5 + $0x28] sm:$0xff]
    %v1082 = vld [vmem:[#allocation5 + $0x30] sm:$0xff]
    %v1083 = vld [vmem:[#allocation5 + $0x38] sm:$0xff]
    %v1084 = vld [vmem:[#allocation9] sm:$0xff]
    %v1085 = vld [vmem:[#allocation9 + $0x8] sm:$0xff]
    %v1086 = vld [vmem:[#allocation9 + $0x10] sm:$0xff]
    %v1087 = vld [vmem:[#allocation9 + $0x18] sm:$0xff]
    %v1088 = vld [vmem:[%s5] sm:$0x1]
    %v1090 = vlaneseq
    %v1091 = vshrl.u32 %v1090, 7
    %v1092 = vsub.s32 0, %v1091
    %v1093 = vrot.slane %v1088, %v1092
    %v1096 = vsel %vm227, %v1076, 0
    %v1099 = vsel %vm227, %v1077, 0
    %v1102 = vsel %vm227, %v1078, 0
    %v1105 = vsel %vm227, %v1079, 0
    %v1108 = vsel %vm227, %v1080, 0
    %v1111 = vsel %vm227, %v1081, 0
    %v1114 = vsel %vm227, %v1082, 0
    %v1117 = vsel %vm227, %v1083, 0
    %1119 = vmatprep.subr.mxu0 0.0
    %1120 = vmatpush1.msra.mxu0 %v1084
    %1121 = vmatprep.subr.mxu0 0.0
    %1122 = vmatpush1.msra.mxu0 %v1085
    %1123 = vmatprep.subr.mxu0 0.0
    %1124 = vmatpush1.msra.mxu0 %v1086
    %1125 = vmatprep.subr.mxu0 0.0
    %1126 = vmatpush1.msra.mxu0 %v1087
    %1127 = vmatprep.subr.mxu0 0.0
    %1128 = vmatpush1.msra.mxu0 0.0
    %1129 = vmatprep.subr.mxu0 0.0
    %1130 = vmatpush1.msra.mxu0 0.0
    %1131 = vmatprep.subr.mxu0 0.0
    %1132 = vmatpush1.msra.mxu0 0.0
    %1133 = vmatprep.subr.mxu0 0.0
    %1134 = vmatpush1.msra.mxu0 0.0
    %1135 = vmatprep.subr.mxu0 0.0
    %1136 = vmatpush1.msra.mxu0 0.0
    %1137 = vmatprep.subr.mxu0 0.0
    %1138 = vmatpush1.msra.mxu0 0.0
    %1139 = vmatprep.subr.mxu0 0.0
    %1140 = vmatpush1.msra.mxu0 0.0
    %1141 = vmatprep.subr.mxu0 0.0
    %1142 = vmatpush1.msra.mxu0 0.0
    %1143 = vmatprep.subr.mxu0 0.0
    %1144 = vmatpush1.msra.mxu0 0.0
    %1145 = vmatprep.subr.mxu0 0.0
    %1146 = vmatpush1.msra.mxu0 0.0
    %1147 = vmatprep.subr.mxu0 0.0
    %1148 = vmatpush1.msra.mxu0 0.0
    %1149 = vmatprep.subr.mxu0 0.0
    %1150 = vmatpush1.msra.mxu0 0.0
    %1151 = vmatprep.subr.mxu0 0.0
    %1152 = vmatpush1.msra.mxu0 0.0
    %1153 = vmatprep.subr.mxu0 0.0
    %1154 = vmatpush1.msra.mxu0 0.0
    %1155 = vmatprep.subr.mxu0 0.0
    %1156 = vmatpush1.msra.mxu0 0.0
    %1157 = vmatprep.subr.mxu0 0.0
    %1158 = vmatpush1.msra.mxu0 0.0
    %1159 = vmatprep.subr.mxu0 0.0
    %1160 = vmatpush1.msra.mxu0 0.0
    %1161 = vmatprep.subr.mxu0 0.0
    %1162 = vmatpush1.msra.mxu0 0.0
    %1163 = vmatprep.subr.mxu0 0.0
    %1164 = vmatpush1.msra.mxu0 0.0
    %1165 = vmatprep.subr.mxu0 0.0
    %1166 = vmatpush1.msra.mxu0 0.0
    %1167 = vmatprep.subr.mxu0 0.0
    %1168 = vmatpush1.msra.mxu0 0.0
    %1169 = vmatprep.subr.mxu0 0.0
    %1170 = vmatpush1.msra.mxu0 0.0
    %1171 = vmatprep.subr.mxu0 0.0
    %1172 = vmatpush1.msra.mxu0 0.0
    %1173 = vmatprep.subr.mxu0 0.0
    %1174 = vmatpush1.msra.mxu0 0.0
    %1175 = vmatprep.subr.mxu0 0.0
    %1176 = vmatpush1.msra.mxu0 0.0
    %1177 = vmatprep.subr.mxu0 0.0
    %1178 = vmatpush1.msra.mxu0 0.0
    %1179 = vmatprep.subr.mxu0 0.0
    %1180 = vmatpush1.msra.mxu0 0.0
    %1181 = vmatprep.subr.mxu0 0.0
    %1182 = vmatpush1.msra.mxu0 0.0
    %1183 = vmatprep.mubr.f32.mxu0 0.0
    %1184 = vmatmul.mubr.f32.gmra.mrb[0].mxu0 %v1096
    %v1185 = vpop.f32.mrb[0].mxu0
    %v1186 = vadd.f32 %v1093, %v1185
    %v1187 = vpop.f32.mrb[0].mxu0
    %1188 = vmatprep.mubr.f32.mxu0 0.0
    %1189 = vmatmul.mubr.f32.gmra.mrb[0].mxu0 %v1099
    %v1190 = vpop.f32.mrb[0].mxu0
    %v1191 = vadd.f32 %v1093, %v1190
    %v1192 = vpop.f32.mrb[0].mxu0
    %1193 = vmatprep.mubr.f32.mxu0 0.0
    %1194 = vmatmul.mubr.f32.gmra.mrb[0].mxu0 %v1102
    %v1195 = vpop.f32.mrb[0].mxu0
    %v1196 = vadd.f32 %v1093, %v1195
    %v1197 = vpop.f32.mrb[0].mxu0
    %1198 = vmatprep.mubr.f32.mxu0 0.0
    %1199 = vmatmul.mubr.f32.gmra.mrb[0].mxu0 %v1105
    %v1200 = vpop.f32.mrb[0].mxu0
    %v1201 = vadd.f32 %v1093, %v1200
    %v1202 = vpop.f32.mrb[0].mxu0
    %1203 = vmatprep.mubr.f32.mxu0 0.0
    %1204 = vmatmul.mubr.f32.gmra.mrb[0].mxu0 %v1108
    %v1205 = vpop.f32.mrb[0].mxu0
    %v1206 = vadd.f32 %v1093, %v1205
    %v1207 = vpop.f32.mrb[0].mxu0
    %1208 = vmatprep.mubr.f32.mxu0 0.0
    %1209 = vmatmul.mubr.f32.gmra.mrb[0].mxu0 %v1111
    %v1210 = vpop.f32.mrb[0].mxu0
    %v1211 = vadd.f32 %v1093, %v1210
    %v1212 = vpop.f32.mrb[0].mxu0
    %1213 = vmatprep.mubr.f32.mxu0 0.0
    %1214 = vmatmul.mubr.f32.gmra.mrb[0].mxu0 %v1114
    %v1215 = vpop.f32.mrb[0].mxu0
    %v1216 = vadd.f32 %v1093, %v1215
    %v1217 = vpop.f32.mrb[0].mxu0
    %1218 = vmatprep.mubr.f32.mxu0 0.0
    %1219 = vmatmul.mubr.f32.gmra.mrb[0].mxu0 %v1117
    %v1220 = vpop.f32.mrb[0].mxu0
    %v1221 = vadd.f32 %v1093, %v1220
    %v1222 = vpop.f32.mrb[0].mxu0
    %1223 = vdwg.mxu0
    %v1224 = vmax.f32 %v1186, 0.0
    %v1225 = vmax.f32 %v1191, 0.0
    %v1226 = vmax.f32 %v1196, 0.0
    %v1227 = vmax.f32 %v1201, 0.0
    %v1228 = vmax.f32 %v1206, 0.0
    %v1229 = vmax.f32 %v1211, 0.0
    %v1230 = vmax.f32 %v1216, 0.0
    %v1231 = vmax.f32 %v1221, 0.0
    %v1232 = vld [vmem:[%s6] sm:$0xff]
    %v1233 = vld [vmem:[%s6 + $0x8] sm:$0xff]
    %v1234 = vld [vmem:[%s6 + $0x10] sm:$0xff]
    %v1235 = vld [vmem:[%s6 + $0x18] sm:$0xff]
    %v1236 = vld [vmem:[%s6 + $0x20] sm:$0xff]
    %v1237 = vld [vmem:[%s6 + $0x28] sm:$0xff]
    %v1238 = vld [vmem:[%s6 + $0x30] sm:$0xff]
    %v1239 = vld [vmem:[%s6 + $0x38] sm:$0xff]
    %v1240 = vld [vmem:[%s7] sm:$0x1]
    %v1242 = vlaneseq
    %v1243 = vshrl.u32 %v1242, 7
    %v1244 = vsub.s32 0, %v1243
    %v1245 = vrot.slane %v1240, %v1244
    %vm1247 = vcmask 523264
    %v1249 = vsel %vm1247, %v1224, 0
    %v1252 = vsel %vm1247, %v1225, 0
    %v1255 = vsel %vm1247, %v1226, 0
    %v1258 = vsel %vm1247, %v1227, 0
    %v1261 = vsel %vm1247, %v1228, 0
    %v1264 = vsel %vm1247, %v1229, 0
    %v1267 = vsel %vm1247, %v1230, 0
    %v1270 = vsel %vm1247, %v1231, 0
    %1272 = vmatprep.subr.mxu0 0.0
    %1273 = vmatpush1.msra.mxu0 %v1232
    %1274 = vmatprep.subr.mxu0 0.0
    %1275 = vmatpush1.msra.mxu0 %v1233
    %1276 = vmatprep.subr.mxu0 0.0
    %1277 = vmatpush1.msra.mxu0 %v1234
    %1278 = vmatprep.subr.mxu0 0.0
    %1279 = vmatpush1.msra.mxu0 %v1235
    %1280 = vmatprep.subr.mxu0 0.0
    %1281 = vmatpush1.msra.mxu0 %v1236
    %1282 = vmatprep.subr.mxu0 0.0
    %1283 = vmatpush1.msra.mxu0 %v1237
    %1284 = vmatprep.subr.mxu0 0.0
    %1285 = vmatpush1.msra.mxu0 %v1238
    %1286 = vmatprep.subr.mxu0 0.0
    %1287 = vmatpush1.msra.mxu0 %v1239
    %1288 = vmatprep.subr.mxu0 0.0
    %1289 = vmatpush1.msra.mxu0 0.0
    %1290 = vmatprep.subr.mxu0 0.0
    %1291 = vmatpush1.msra.mxu0 0.0
    %1292 = vmatprep.subr.mxu0 0.0
    %1293 = vmatpush1.msra.mxu0 0.0
    %1294 = vmatprep.subr.mxu0 0.0
    %1295 = vmatpush1.msra.mxu0 0.0
    %1296 = vmatprep.subr.mxu0 0.0
    %1297 = vmatpush1.msra.mxu0 0.0
    %1298 = vmatprep.subr.mxu0 0.0
    %1299 = vmatpush1.msra.mxu0 0.0
    %1300 = vmatprep.subr.mxu0 0.0
    %1301 = vmatpush1.msra.mxu0 0.0
    %1302 = vmatprep.subr.mxu0 0.0
    %1303 = vmatpush1.msra.mxu0 0.0
    %1304 = vmatprep.subr.mxu0 0.0
    %1305 = vmatpush1.msra.mxu0 0.0
    %1306 = vmatprep.subr.mxu0 0.0
    %1307 = vmatpush1.msra.mxu0 0.0
    %1308 = vmatprep.subr.mxu0 0.0
    %1309 = vmatpush1.msra.mxu0 0.0
    %1310 = vmatprep.subr.mxu0 0.0
    %1311 = vmatpush1.msra.mxu0 0.0
    %1312 = vmatprep.subr.mxu0 0.0
    %1313 = vmatpush1.msra.mxu0 0.0
    %1314 = vmatprep.subr.mxu0 0.0
    %1315 = vmatpush1.msra.mxu0 0.0
    %1316 = vmatprep.subr.mxu0 0.0
    %1317 = vmatpush1.msra.mxu0 0.0
    %1318 = vmatprep.subr.mxu0 0.0
    %1319 = vmatpush1.msra.mxu0 0.0
    %1320 = vmatprep.subr.mxu0 0.0
    %1321 = vmatpush1.msra.mxu0 0.0
    %1322 = vmatprep.subr.mxu0 0.0
    %1323 = vmatpush1.msra.mxu0 0.0
    %1324 = vmatprep.subr.mxu0 0.0
    %1325 = vmatpush1.msra.mxu0 0.0
    %1326 = vmatprep.subr.mxu0 0.0
    %1327 = vmatpush1.msra.mxu0 0.0
    %1328 = vmatprep.subr.mxu0 0.0
    %1329 = vmatpush1.msra.mxu0 0.0
    %1330 = vmatprep.subr.mxu0 0.0
    %1331 = vmatpush1.msra.mxu0 0.0
    %1332 = vmatprep.subr.mxu0 0.0
    %1333 = vmatpush1.msra.mxu0 0.0
    %1334 = vmatprep.subr.mxu0 0.0
    %1335 = vmatpush1.msra.mxu0 0.0
    %1336 = vmatprep.mubr.f32.mxu0 0.0
    %1337 = vmatmul.mubr.f32.gmra.mrb[0].mxu0 %v1249
    %v1338 = vpop.f32.mrb[0].mxu0
    %v1339 = vadd.f32 %v1245, %v1338
    %v1340 = vpop.f32.mrb[0].mxu0
    %1341 = vmatprep.mubr.f32.mxu0 0.0
    %1342 = vmatmul.mubr.f32.gmra.mrb[0].mxu0 %v1252
    %v1343 = vpop.f32.mrb[0].mxu0
    %v1344 = vadd.f32 %v1245, %v1343
    %v1345 = vpop.f32.mrb[0].mxu0
    %1346 = vmatprep.mubr.f32.mxu0 0.0
    %1347 = vmatmul.mubr.f32.gmra.mrb[0].mxu0 %v1255
    %v1348 = vpop.f32.mrb[0].mxu0
    %v1349 = vadd.f32 %v1245, %v1348
    %v1350 = vpop.f32.mrb[0].mxu0
    %1351 = vmatprep.mubr.f32.mxu0 0.0
    %1352 = vmatmul.mubr.f32.gmra.mrb[0].mxu0 %v1258
    %v1353 = vpop.f32.mrb[0].mxu0
    %v1354 = vadd.f32 %v1245, %v1353
    %v1355 = vpop.f32.mrb[0].mxu0
    %1356 = vmatprep.mubr.f32.mxu0 0.0
    %1357 = vmatmul.mubr.f32.gmra.mrb[0].mxu0 %v1261
    %v1358 = vpop.f32.mrb[0].mxu0
    %v1359 = vadd.f32 %v1245, %v1358
    %v1360 = vpop.f32.mrb[0].mxu0
    %1361 = vmatprep.mubr.f32.mxu0 0.0
    %1362 = vmatmul.mubr.f32.gmra.mrb[0].mxu0 %v1264
    %v1363 = vpop.f32.mrb[0].mxu0
    %v1364 = vadd.f32 %v1245, %v1363
    %v1365 = vpop.f32.mrb[0].mxu0
    %1366 = vmatprep.mubr.f32.mxu0 0.0
    %1367 = vmatmul.mubr.f32.gmra.mrb[0].mxu0 %v1267
    %v1368 = vpop.f32.mrb[0].mxu0
    %v1369 = vadd.f32 %v1245, %v1368
    %v1370 = vpop.f32.mrb[0].mxu0
    %1371 = vmatprep.mubr.f32.mxu0 0.0
    %1372 = vmatmul.mubr.f32.gmra.mrb[0].mxu0 %v1270
    %v1373 = vpop.f32.mrb[0].mxu0
    %v1374 = vadd.f32 %v1245, %v1373
    %v1375 = vpop.f32.mrb[0].mxu0
    %1376 = vdwg.mxu0
    %1377 = vst [vmem:[#allocation11] sm:$0xff] %v1339
    %1378 = vst [vmem:[#allocation11 + $0x8] sm:$0xff] %v1344
    %1379 = vst [vmem:[#allocation11 + $0x10] sm:$0xff] %v1349
    %1380 = vst [vmem:[#allocation11 + $0x18] sm:$0xff] %v1354
    %1381 = vst [vmem:[#allocation11 + $0x20] sm:$0xff] %v1359
    %1382 = vst [vmem:[#allocation11 + $0x28] sm:$0xff] %v1364
    %1383 = vst [vmem:[#allocation11 + $0x30] sm:$0xff] %v1369
    %1384 = vst [vmem:[#allocation11 + $0x38] sm:$0xff] %v1374
    // Predicated region
    $region46: #{tpu_custom_call.1} parent=1 // pred_check
      _
    $region47: #{tpu_custom_call.1} parent=1 // pred_check_branch
      %1386 = sbr.rel (0) target = $region49
    $region48: #{tpu_custom_call.1} parent=1 // pred_region
      %s1388 = ssub.s32 1024, 1024
      %1389 = vsyncadd [#allocation8], %s1388
      %s1390 = sshll.u32 [#allocation11], 4
      %s1391 = int_to_ptr.vmem [resolvable:$true] %s1390
      %1396 = dma.vmem_to_hbm [thread:$0]  %s1391, 1024, %s8, [#allocation8], 128, 128, 8
    $region49: #{tpu_custom_call.1} parent=1 // pred_fallthru
      _
    // Predicated region
    $region50: #{tpu_custom_call.1} parent=1 // pred_check
      _
    $region51: #{tpu_custom_call.1} parent=1 // pred_check_branch
      %1398 = sbr.rel (0) target = $region53
    $region52: #{tpu_custom_call.1} parent=1 // pred_region
      %1399 = dma.done [#allocation8], 1024
    $region53: #{tpu_custom_call.1} parent=1 // pred_fallthru
      _
    %1400 = vsyncpa [#allocation7], 1
    %1401 = vsyncpa [#allocation10], 1
    %1402 = vsyncpa [#allocation8], 1

</llo_original>
